<compile_context>
chip_gen: v7x
topology: tpu7x:2x2x1
jax: 0.10.0
libtpu: 0.0.40
codegen_flags: <defaults>
</compile_context>

<pallas_src>
import jax
import jax.numpy as jnp
from jax import lax
from jax.experimental import pallas as pl
from jax.experimental.pallas import tpu as pltpu

HIDDEN = 64
INPUT_SIZE = 14
NUM_LAYERS = 2
OUTPUT_SIZE = 1

# Row offsets inside the packed bf16 weight array.
_WIH0_ROWS = 16                        # wih0 padded 14 -> 16 (bf16 sublane tile)
_WHH0_OFF = _WIH0_ROWS                 # 16
_W1_OFF = _WHH0_OFF + HIDDEN           # 80
_W_ROWS = _W1_OFF + 2 * HIDDEN         # 208


def _lstm_kernel(x_ref, s_ref, w_ref, p_ref, out_ref, sn_ref):
    H = HIDDEN
    B = s_ref.shape[1]
    T = x_ref.shape[0] // B

    # Zero-cost static views into the packed weight array (loads happen at
    # point of use so the regalloc can re-stream from VMEM instead of pinning
    # ~24 vregs of weights across the unrolled loop).
    wih0 = w_ref.at[0:INPUT_SIZE, :]                 # (14, 4H)  bf16
    whh0 = w_ref.at[_WHH0_OFF:_WHH0_OFF + H, :]      # (H, 4H)   bf16
    w1 = w_ref.at[_W1_OFF:_W1_OFF + 2 * H, :]        # (2H, 4H)  bf16
    b0 = p_ref[0:1, :]                               # (1, 4H)   f32
    b1 = p_ref[1:2, :]                               # (1, 4H)   f32

    # ---- hoisted layer-0 input projection: one MXU GEMM, bias folded in ----
    x_bf = x_ref[...].astype(jnp.bfloat16)                        # (T*B, I)
    xg = jnp.dot(x_bf, wih0[...],
                 preferred_element_type=jnp.float32) + b0         # (T*B, 4H)

    # Hoisted lane mask/constant for the single-tanh gate activation:
    #   sigmoid(z) = 0.5 * tanh(z / 2) + 0.5
    lane = lax.broadcasted_iota(jnp.int32, (B, 4 * H), 1)
    is_g = (lane >= 2 * H) & (lane < 3 * H)
    pre = jnp.where(is_g, 1.0, 0.5)                  # halve the i/f/o lanes

    def activate(gates):
        y = jnp.tanh(gates * pre)                    # ONE full-width EUP push
        return jnp.where(is_g, y, 0.5 * y + 0.5)

    def combine(acts, c):
        i = acts[:, 0 * H:1 * H]
        f = acts[:, 1 * H:2 * H]
        g = acts[:, 2 * H:3 * H]
        o = acts[:, 3 * H:4 * H]
        c_new = f * c + i * g
        h_new = o * jnp.tanh(c_new)
        return h_new, c_new

    # Unpack carried state (h in lanes 0:H, c in lanes H:2H).
    h0, c0 = s_ref[0, :, :H], s_ref[0, :, H:]
    h1, c1 = s_ref[1, :, :H], s_ref[1, :, H:]

    # ---- fully unrolled recurrence (T is a compile-time constant) ----
    for t in range(T):
        # layer 0: only the recurrent matmul sits on the serial critical path
        g0 = (jnp.dot(h0.astype(jnp.bfloat16), whh0[...],
                      preferred_element_type=jnp.float32)
              + xg[t * B:(t + 1) * B])
        h0, c0 = combine(activate(g0), c0)

        # layer 1: fused [W_ih; W_hh] -> single dot on a 128-lane concat
        hcat = jnp.concatenate([h0, h1], axis=1).astype(jnp.bfloat16)
        g1 = jnp.dot(hcat, w1[...],
                     preferred_element_type=jnp.float32) + b1
        h1, c1 = combine(activate(g1), c1)

    # ---- epilogue: fc(h1_last) as VPU multiply + lane reduce (N == 1) ----
    wfc = p_ref[2:3, :H]                             # (1, H)  f32
    bfc = p_ref[3:4, 0:1]                            # (1, 1)  f32
    out_ref[...] = jnp.sum(h1 * wfc, axis=1, keepdims=True) + bfc

    # Lane-dense (B, 2H) stores of the carried state.
    sn_ref[0] = jnp.concatenate([h0, c0], axis=1)
    sn_ref[1] = jnp.concatenate([h1, c1], axis=1)


@jax.jit
def lstm_forward(x, hx, cx, params):
    """x: [B, T, input_size] f32; hx, cx: [num_layers, B, H] f32."""
    B, T, _ = x.shape
    w_big, p_small = params
    # Time-major flatten; stays f32 (cast to bf16 happens in-kernel).
    x_tm = jnp.transpose(x, (1, 0, 2)).reshape(T * B, INPUT_SIZE)
    # Pack h/c into one lane-dense (L, B, 2H) state array.
    state0 = jnp.concatenate([hx, cx], axis=-1).astype(jnp.float32)

    vmem = pl.BlockSpec(memory_space=pltpu.MemorySpace.VMEM)
    out, state_n = pl.pallas_call(
        _lstm_kernel,
        out_shape=(
            jax.ShapeDtypeStruct((B, OUTPUT_SIZE), jnp.float32),
            jax.ShapeDtypeStruct((NUM_LAYERS, B, 2 * HIDDEN), jnp.float32),
        ),
        in_specs=[vmem] * 4,
        out_specs=(vmem, vmem),
    )(x_tm, state0, w_big, p_small)
    hn = state_n[..., :HIDDEN]
    cn = state_n[..., HIDDEN:]
    return out, hn, cn


def init_params(key):
    """Deterministic init matching torch.nn.LSTM / nn.Linear shapes, packed:
      w_big  (208, 4H) bf16 : rows 0:14 = W_ih_l0^T (rows 14:16 zero pad),
                              rows 16:80 = W_hh_l0^T,
                              rows 80:208 = [W_ih_l1^T ; W_hh_l1^T]  (fused)
      p_small (4, 4H)  f32  : row 0 = b_ih_l0+b_hh_l0, row 1 = b_ih_l1+b_hh_l1,
                              row 2[:H] = w_fc, row 3[0] = b_fc
    """
    H, I = HIDDEN, INPUT_SIZE
    k = 1.0 / jnp.sqrt(jnp.float32(H))
    keys = jax.random.split(key, 10)

    def u(kk, shape):
        return jax.random.uniform(kk, shape, jnp.float32, minval=-k, maxval=k)

    w_ih_l0 = u(keys[0], (4 * H, I))
    w_hh_l0 = u(keys[1], (4 * H, H))
    b_ih_l0 = u(keys[2], (4 * H,))
    b_hh_l0 = u(keys[3], (4 * H,))
    w_ih_l1 = u(keys[4], (4 * H, H))
    w_hh_l1 = u(keys[5], (4 * H, H))
    b_ih_l1 = u(keys[6], (4 * H,))
    b_hh_l1 = u(keys[7], (4 * H,))
    w_fc = u(keys[8], (OUTPUT_SIZE, H))
    b_fc = u(keys[9], (OUTPUT_SIZE,))

    wih0_pad = jnp.zeros((_WIH0_ROWS, 4 * H), jnp.float32).at[:I].set(w_ih_l0.T)
    w1_fused = jnp.concatenate([w_ih_l1.T, w_hh_l1.T], axis=0)       # (2H, 4H)
    w_big = jnp.concatenate([wih0_pad, w_hh_l0.T, w1_fused],
                            axis=0).astype(jnp.bfloat16)             # (208, 4H)

    p_small = jnp.zeros((4, 4 * H), jnp.float32)
    p_small = p_small.at[0].set(b_ih_l0 + b_hh_l0)
    p_small = p_small.at[1].set(b_ih_l1 + b_hh_l1)
    p_small = p_small.at[2, :H].set(w_fc[0])
    p_small = p_small.at[3, 0].set(b_fc[0])
    return (w_big, p_small)


def lstm_reference(x, hx, cx, params):
    """Pure-JAX reference with identical semantics (same bf16 MXU operands,
    f32 accumulation / elementwise, standard sigmoid) for correctness."""
    w_big, p_small = params
    H, I = HIDDEN, INPUT_SIZE
    wih0 = w_big[0:I, :]
    whh0 = w_big[_WHH0_OFF:_WHH0_OFF + H, :]
    w1 = w_big[_W1_OFF:_W1_OFF + 2 * H, :]
    b0 = p_small[0:1, :]
    b1 = p_small[1:2, :]
    wfc = p_small[2:3, :H]
    bfc = p_small[3:4, 0:1]

    B, T, _ = x.shape
    xb = x.astype(jnp.bfloat16)
    h0, c0 = hx[0], cx[0]
    h1, c1 = hx[1], cx[1]

    def cell(gates, c):
        i = jax.nn.sigmoid(gates[:, 0 * H:1 * H])
        f = jax.nn.sigmoid(gates[:, 1 * H:2 * H])
        g = jnp.tanh(gates[:, 2 * H:3 * H])
        o = jax.nn.sigmoid(gates[:, 3 * H:4 * H])
        c_new = f * c + i * g
        return o * jnp.tanh(c_new), c_new

    for t in range(T):
        x_t = xb[:, t, :]
        g0 = (jnp.dot(x_t, wih0, preferred_element_type=jnp.float32)
              + jnp.dot(h0.astype(jnp.bfloat16), whh0,
                        preferred_element_type=jnp.float32)
              + b0)
        h0, c0 = cell(g0, c0)
        hcat = jnp.concatenate([h0, h1], axis=1).astype(jnp.bfloat16)
        g1 = jnp.dot(hcat, w1, preferred_element_type=jnp.float32) + b1
        h1, c1 = cell(g1, c1)

    out = jnp.sum(h1 * wfc, axis=1, keepdims=True) + bfc
    hn = jnp.stack([h0, h1], axis=0)
    cn = jnp.stack([c0, c1], axis=0)
    return out, hn, cn


if __name__ == "__main__":
    key = jax.random.PRNGKey(0)
    k_x, k_p = jax.random.split(key)

    B, T = 1, 8   # matches the PyTorch spec (batch_size=1, batch_first)
    x = jax.random.normal(k_x, (B, T, INPUT_SIZE), dtype=jnp.float32)
    hx = jnp.zeros((NUM_LAYERS, B, HIDDEN), dtype=jnp.float32)
    cx = jnp.zeros((NUM_LAYERS, B, HIDDEN), dtype=jnp.float32)
    params = init_params(k_p)

    out, hn, cn = lstm_forward(x, hx, cx, params)
    jax.block_until_ready((out, hn, cn))

    out_r, hn_r, cn_r = lstm_reference(x, hx, cx, params)
    assert jnp.allclose(out, out_r, atol=1e-4, rtol=1e-4), \
        float(jnp.max(jnp.abs(out - out_r)))
    assert jnp.allclose(hn, hn_r, atol=1e-4, rtol=1e-4), \
        float(jnp.max(jnp.abs(hn - hn_r)))
    assert jnp.allclose(cn, cn_r, atol=1e-4, rtol=1e-4), \
        float(jnp.max(jnp.abs(cn - cn_r)))

    print("KERNEL_OK")
</pallas_src>

<mosaic_0001>
module attributes {stable_mosaic.version = 11 : i64} {
  func.func @_lstm_kernel(%arg0: memref<8x14xf32, #tpu.memory_space<vmem>>, %arg1: memref<2x1x128xf32, #tpu.memory_space<vmem>>, %arg2: memref<208x256xbf16, #tpu.memory_space<vmem>>, %arg3: memref<4x256xf32, #tpu.memory_space<vmem>>, %arg4: memref<1x1xf32, #tpu.memory_space<vmem>>, %arg5: memref<2x1x128xf32, #tpu.memory_space<vmem>>) attributes {dimension_semantics = [], scalar_prefetch = 0 : i64, scratch_operands = 0 : i64, tpu.core_type = #tpu.core_type<tc>} {
    %c0 = arith.constant 0 : index
    %c0_0 = arith.constant 0 : index
    %0 = vector.load %arg3[%c0, %c0_0] : memref<4x256xf32, #tpu.memory_space<vmem>>, vector<1x256xf32>
    %c1 = arith.constant 1 : index
    %c0_1 = arith.constant 0 : index
    %1 = vector.load %arg3[%c1, %c0_1] : memref<4x256xf32, #tpu.memory_space<vmem>>, vector<1x256xf32>
    %c0_2 = arith.constant 0 : index
    %c0_3 = arith.constant 0 : index
    %2 = vector.load %arg0[%c0_2, %c0_3] : memref<8x14xf32, #tpu.memory_space<vmem>>, vector<8x14xf32>
    %3 = arith.truncf %2 : vector<8x14xf32> to vector<8x14xbf16>
    %c0_4 = arith.constant 0 : index
    %c0_5 = arith.constant 0 : index
    %4 = vector.load %arg2[%c0_4, %c0_5] : memref<208x256xbf16, #tpu.memory_space<vmem>>, vector<14x256xbf16>
    %cst = arith.constant dense<0.000000e+00> : vector<8x256xf32>
    %5 = tpu.matmul %3, %4, %cst {dimension_numbers = #tpu.dot_dimension_numbers<[1], [0], [0], [1], [0, 0, 1, 1], [], []>} : vector<8x14xbf16>, vector<14x256xbf16>, vector<8x256xf32> -> vector<8x256xf32>
    %6 = vector.broadcast %0 : vector<1x256xf32> to vector<8x256xf32>
    %7 = arith.addf %5, %6 : vector<8x256xf32>
    %8 = tpu.iota {dimensions = array<i32: 1>} : vector<1x256xi32>
    %c128_i32 = arith.constant 128 : i32
    %9 = vector.broadcast %c128_i32 : i32 to vector<1x256xi32>
    %10 = arith.cmpi sge, %8, %9 : vector<1x256xi32>
    %c192_i32 = arith.constant 192 : i32
    %11 = vector.broadcast %c192_i32 : i32 to vector<1x256xi32>
    %12 = arith.cmpi slt, %8, %11 : vector<1x256xi32>
    %13 = arith.andi %10, %12 : vector<1x256xi1>
    %cst_6 = arith.constant 1.000000e+00 : f32
    %cst_7 = arith.constant 5.000000e-01 : f32
    %14 = vector.broadcast %cst_6 : f32 to vector<1x256xf32>
    %15 = vector.broadcast %cst_7 : f32 to vector<1x256xf32>
    %16 = arith.select %13, %14, %15 : vector<1x256xi1>, vector<1x256xf32>
    %c0_8 = arith.constant 0 : index
    %c0_9 = arith.constant 0 : index
    %c0_10 = arith.constant 0 : index
    %17 = vector.load %arg1[%c0_8, %c0_9, %c0_10] : memref<2x1x128xf32, #tpu.memory_space<vmem>>, vector<1x1x64xf32>
    %18 = vector.shape_cast %17 : vector<1x1x64xf32> to vector<1x64xf32>
    %c0_11 = arith.constant 0 : index
    %c0_12 = arith.constant 0 : index
    %c64 = arith.constant 64 : index
    %19 = vector.load %arg1[%c0_11, %c0_12, %c64] : memref<2x1x128xf32, #tpu.memory_space<vmem>>, vector<1x1x64xf32>
    %20 = vector.shape_cast %19 : vector<1x1x64xf32> to vector<1x64xf32>
    %c1_13 = arith.constant 1 : index
    %c0_14 = arith.constant 0 : index
    %c0_15 = arith.constant 0 : index
    %21 = vector.load %arg1[%c1_13, %c0_14, %c0_15] : memref<2x1x128xf32, #tpu.memory_space<vmem>>, vector<1x1x64xf32>
    %22 = vector.shape_cast %21 : vector<1x1x64xf32> to vector<1x64xf32>
    %c1_16 = arith.constant 1 : index
    %c0_17 = arith.constant 0 : index
    %c64_18 = arith.constant 64 : index
    %23 = vector.load %arg1[%c1_16, %c0_17, %c64_18] : memref<2x1x128xf32, #tpu.memory_space<vmem>>, vector<1x1x64xf32>
    %24 = vector.shape_cast %23 : vector<1x1x64xf32> to vector<1x64xf32>
    %25 = arith.truncf %18 : vector<1x64xf32> to vector<1x64xbf16>
    %c16 = arith.constant 16 : index
    %c0_19 = arith.constant 0 : index
    %26 = vector.load %arg2[%c16, %c0_19] : memref<208x256xbf16, #tpu.memory_space<vmem>>, vector<64x256xbf16>
    %cst_20 = arith.constant dense<0.000000e+00> : vector<1x256xf32>
    %27 = tpu.matmul %25, %26, %cst_20 {dimension_numbers = #tpu.dot_dimension_numbers<[1], [0], [0], [1], [0, 0, 1, 1], [], []>} : vector<1x64xbf16>, vector<64x256xbf16>, vector<1x256xf32> -> vector<1x256xf32>
    %28 = vector.extract_strided_slice %7 {offsets = [0, 0], sizes = [1, 256], strides = [1, 1]} : vector<8x256xf32> to vector<1x256xf32>
    %29 = arith.addf %27, %28 : vector<1x256xf32>
    %30 = arith.mulf %29, %16 : vector<1x256xf32>
    %31 = math.tanh %30 : vector<1x256xf32>
    %cst_21 = arith.constant 5.000000e-01 : f32
    %32 = vector.broadcast %cst_21 : f32 to vector<1x256xf32>
    %33 = arith.mulf %32, %31 : vector<1x256xf32>
    %cst_22 = arith.constant 5.000000e-01 : f32
    %34 = vector.broadcast %cst_22 : f32 to vector<1x256xf32>
    %35 = arith.addf %33, %34 : vector<1x256xf32>
    %36 = arith.select %13, %31, %35 : vector<1x256xi1>, vector<1x256xf32>
    %37 = vector.extract_strided_slice %36 {offsets = [0, 0], sizes = [1, 64], strides = [1, 1]} : vector<1x256xf32> to vector<1x64xf32>
    %38 = vector.extract_strided_slice %36 {offsets = [0, 64], sizes = [1, 64], strides = [1, 1]} : vector<1x256xf32> to vector<1x64xf32>
    %39 = vector.extract_strided_slice %36 {offsets = [0, 128], sizes = [1, 64], strides = [1, 1]} : vector<1x256xf32> to vector<1x64xf32>
    %40 = vector.extract_strided_slice %36 {offsets = [0, 192], sizes = [1, 64], strides = [1, 1]} : vector<1x256xf32> to vector<1x64xf32>
    %41 = arith.mulf %38, %20 : vector<1x64xf32>
    %42 = arith.mulf %37, %39 : vector<1x64xf32>
    %43 = arith.addf %41, %42 : vector<1x64xf32>
    %44 = math.tanh %43 : vector<1x64xf32>
    %45 = arith.mulf %40, %44 : vector<1x64xf32>
    %46 = tpu.concatenate %45, %22 in 1 : vector<1x64xf32>, vector<1x64xf32> -> vector<1x128xf32>
    %47 = arith.truncf %46 : vector<1x128xf32> to vector<1x128xbf16>
    %c80 = arith.constant 80 : index
    %c0_23 = arith.constant 0 : index
    %48 = vector.load %arg2[%c80, %c0_23] : memref<208x256xbf16, #tpu.memory_space<vmem>>, vector<128x256xbf16>
    %cst_24 = arith.constant dense<0.000000e+00> : vector<1x256xf32>
    %49 = tpu.matmul %47, %48, %cst_24 {dimension_numbers = #tpu.dot_dimension_numbers<[1], [0], [0], [1], [0, 0, 1, 1], [], []>} : vector<1x128xbf16>, vector<128x256xbf16>, vector<1x256xf32> -> vector<1x256xf32>
    %50 = arith.addf %49, %1 : vector<1x256xf32>
    %51 = arith.mulf %50, %16 : vector<1x256xf32>
    %52 = math.tanh %51 : vector<1x256xf32>
    %cst_25 = arith.constant 5.000000e-01 : f32
    %53 = vector.broadcast %cst_25 : f32 to vector<1x256xf32>
    %54 = arith.mulf %53, %52 : vector<1x256xf32>
    %cst_26 = arith.constant 5.000000e-01 : f32
    %55 = vector.broadcast %cst_26 : f32 to vector<1x256xf32>
    %56 = arith.addf %54, %55 : vector<1x256xf32>
    %57 = arith.select %13, %52, %56 : vector<1x256xi1>, vector<1x256xf32>
    %58 = vector.extract_strided_slice %57 {offsets = [0, 0], sizes = [1, 64], strides = [1, 1]} : vector<1x256xf32> to vector<1x64xf32>
    %59 = vector.extract_strided_slice %57 {offsets = [0, 64], sizes = [1, 64], strides = [1, 1]} : vector<1x256xf32> to vector<1x64xf32>
    %60 = vector.extract_strided_slice %57 {offsets = [0, 128], sizes = [1, 64], strides = [1, 1]} : vector<1x256xf32> to vector<1x64xf32>
    %61 = vector.extract_strided_slice %57 {offsets = [0, 192], sizes = [1, 64], strides = [1, 1]} : vector<1x256xf32> to vector<1x64xf32>
    %62 = arith.mulf %59, %24 : vector<1x64xf32>
    %63 = arith.mulf %58, %60 : vector<1x64xf32>
    %64 = arith.addf %62, %63 : vector<1x64xf32>
    %65 = math.tanh %64 : vector<1x64xf32>
    %66 = arith.mulf %61, %65 : vector<1x64xf32>
    %67 = arith.truncf %45 : vector<1x64xf32> to vector<1x64xbf16>
    %c16_27 = arith.constant 16 : index
    %c0_28 = arith.constant 0 : index
    %68 = vector.load %arg2[%c16_27, %c0_28] : memref<208x256xbf16, #tpu.memory_space<vmem>>, vector<64x256xbf16>
    %cst_29 = arith.constant dense<0.000000e+00> : vector<1x256xf32>
    %69 = tpu.matmul %67, %68, %cst_29 {dimension_numbers = #tpu.dot_dimension_numbers<[1], [0], [0], [1], [0, 0, 1, 1], [], []>} : vector<1x64xbf16>, vector<64x256xbf16>, vector<1x256xf32> -> vector<1x256xf32>
    %70 = vector.extract_strided_slice %7 {offsets = [1, 0], sizes = [1, 256], strides = [1, 1]} : vector<8x256xf32> to vector<1x256xf32>
    %71 = arith.addf %69, %70 : vector<1x256xf32>
    %72 = arith.mulf %71, %16 : vector<1x256xf32>
    %73 = math.tanh %72 : vector<1x256xf32>
    %cst_30 = arith.constant 5.000000e-01 : f32
    %74 = vector.broadcast %cst_30 : f32 to vector<1x256xf32>
    %75 = arith.mulf %74, %73 : vector<1x256xf32>
    %cst_31 = arith.constant 5.000000e-01 : f32
    %76 = vector.broadcast %cst_31 : f32 to vector<1x256xf32>
    %77 = arith.addf %75, %76 : vector<1x256xf32>
    %78 = arith.select %13, %73, %77 : vector<1x256xi1>, vector<1x256xf32>
    %79 = vector.extract_strided_slice %78 {offsets = [0, 0], sizes = [1, 64], strides = [1, 1]} : vector<1x256xf32> to vector<1x64xf32>
    %80 = vector.extract_strided_slice %78 {offsets = [0, 64], sizes = [1, 64], strides = [1, 1]} : vector<1x256xf32> to vector<1x64xf32>
    %81 = vector.extract_strided_slice %78 {offsets = [0, 128], sizes = [1, 64], strides = [1, 1]} : vector<1x256xf32> to vector<1x64xf32>
    %82 = vector.extract_strided_slice %78 {offsets = [0, 192], sizes = [1, 64], strides = [1, 1]} : vector<1x256xf32> to vector<1x64xf32>
    %83 = arith.mulf %80, %43 : vector<1x64xf32>
    %84 = arith.mulf %79, %81 : vector<1x64xf32>
    %85 = arith.addf %83, %84 : vector<1x64xf32>
    %86 = math.tanh %85 : vector<1x64xf32>
    %87 = arith.mulf %82, %86 : vector<1x64xf32>
    %88 = tpu.concatenate %87, %66 in 1 : vector<1x64xf32>, vector<1x64xf32> -> vector<1x128xf32>
    %89 = arith.truncf %88 : vector<1x128xf32> to vector<1x128xbf16>
    %c80_32 = arith.constant 80 : index
    %c0_33 = arith.constant 0 : index
    %90 = vector.load %arg2[%c80_32, %c0_33] : memref<208x256xbf16, #tpu.memory_space<vmem>>, vector<128x256xbf16>
    %cst_34 = arith.constant dense<0.000000e+00> : vector<1x256xf32>
    %91 = tpu.matmul %89, %90, %cst_34 {dimension_numbers = #tpu.dot_dimension_numbers<[1], [0], [0], [1], [0, 0, 1, 1], [], []>} : vector<1x128xbf16>, vector<128x256xbf16>, vector<1x256xf32> -> vector<1x256xf32>
    %92 = arith.addf %91, %1 : vector<1x256xf32>
    %93 = arith.mulf %92, %16 : vector<1x256xf32>
    %94 = math.tanh %93 : vector<1x256xf32>
    %cst_35 = arith.constant 5.000000e-01 : f32
    %95 = vector.broadcast %cst_35 : f32 to vector<1x256xf32>
    %96 = arith.mulf %95, %94 : vector<1x256xf32>
    %cst_36 = arith.constant 5.000000e-01 : f32
    %97 = vector.broadcast %cst_36 : f32 to vector<1x256xf32>
    %98 = arith.addf %96, %97 : vector<1x256xf32>
    %99 = arith.select %13, %94, %98 : vector<1x256xi1>, vector<1x256xf32>
    %100 = vector.extract_strided_slice %99 {offsets = [0, 0], sizes = [1, 64], strides = [1, 1]} : vector<1x256xf32> to vector<1x64xf32>
    %101 = vector.extract_strided_slice %99 {offsets = [0, 64], sizes = [1, 64], strides = [1, 1]} : vector<1x256xf32> to vector<1x64xf32>
    %102 = vector.extract_strided_slice %99 {offsets = [0, 128], sizes = [1, 64], strides = [1, 1]} : vector<1x256xf32> to vector<1x64xf32>
    %103 = vector.extract_strided_slice %99 {offsets = [0, 192], sizes = [1, 64], strides = [1, 1]} : vector<1x256xf32> to vector<1x64xf32>
    %104 = arith.mulf %101, %64 : vector<1x64xf32>
    %105 = arith.mulf %100, %102 : vector<1x64xf32>
    %106 = arith.addf %104, %105 : vector<1x64xf32>
    %107 = math.tanh %106 : vector<1x64xf32>
    %108 = arith.mulf %103, %107 : vector<1x64xf32>
    %109 = arith.truncf %87 : vector<1x64xf32> to vector<1x64xbf16>
    %c16_37 = arith.constant 16 : index
    %c0_38 = arith.constant 0 : index
    %110 = vector.load %arg2[%c16_37, %c0_38] : memref<208x256xbf16, #tpu.memory_space<vmem>>, vector<64x256xbf16>
    %cst_39 = arith.constant dense<0.000000e+00> : vector<1x256xf32>
    %111 = tpu.matmul %109, %110, %cst_39 {dimension_numbers = #tpu.dot_dimension_numbers<[1], [0], [0], [1], [0, 0, 1, 1], [], []>} : vector<1x64xbf16>, vector<64x256xbf16>, vector<1x256xf32> -> vector<1x256xf32>
    %112 = vector.extract_strided_slice %7 {offsets = [2, 0], sizes = [1, 256], strides = [1, 1]} : vector<8x256xf32> to vector<1x256xf32>
    %113 = arith.addf %111, %112 : vector<1x256xf32>
    %114 = arith.mulf %113, %16 : vector<1x256xf32>
    %115 = math.tanh %114 : vector<1x256xf32>
    %cst_40 = arith.constant 5.000000e-01 : f32
    %116 = vector.broadcast %cst_40 : f32 to vector<1x256xf32>
    %117 = arith.mulf %116, %115 : vector<1x256xf32>
    %cst_41 = arith.constant 5.000000e-01 : f32
    %118 = vector.broadcast %cst_41 : f32 to vector<1x256xf32>
    %119 = arith.addf %117, %118 : vector<1x256xf32>
    %120 = arith.select %13, %115, %119 : vector<1x256xi1>, vector<1x256xf32>
    %121 = vector.extract_strided_slice %120 {offsets = [0, 0], sizes = [1, 64], strides = [1, 1]} : vector<1x256xf32> to vector<1x64xf32>
    %122 = vector.extract_strided_slice %120 {offsets = [0, 64], sizes = [1, 64], strides = [1, 1]} : vector<1x256xf32> to vector<1x64xf32>
    %123 = vector.extract_strided_slice %120 {offsets = [0, 128], sizes = [1, 64], strides = [1, 1]} : vector<1x256xf32> to vector<1x64xf32>
    %124 = vector.extract_strided_slice %120 {offsets = [0, 192], sizes = [1, 64], strides = [1, 1]} : vector<1x256xf32> to vector<1x64xf32>
    %125 = arith.mulf %122, %85 : vector<1x64xf32>
    %126 = arith.mulf %121, %123 : vector<1x64xf32>
    %127 = arith.addf %125, %126 : vector<1x64xf32>
    %128 = math.tanh %127 : vector<1x64xf32>
    %129 = arith.mulf %124, %128 : vector<1x64xf32>
    %130 = tpu.concatenate %129, %108 in 1 : vector<1x64xf32>, vector<1x64xf32> -> vector<1x128xf32>
    %131 = arith.truncf %130 : vector<1x128xf32> to vector<1x128xbf16>
    %c80_42 = arith.constant 80 : index
    %c0_43 = arith.constant 0 : index
    %132 = vector.load %arg2[%c80_42, %c0_43] : memref<208x256xbf16, #tpu.memory_space<vmem>>, vector<128x256xbf16>
    %cst_44 = arith.constant dense<0.000000e+00> : vector<1x256xf32>
    %133 = tpu.matmul %131, %132, %cst_44 {dimension_numbers = #tpu.dot_dimension_numbers<[1], [0], [0], [1], [0, 0, 1, 1], [], []>} : vector<1x128xbf16>, vector<128x256xbf16>, vector<1x256xf32> -> vector<1x256xf32>
    %134 = arith.addf %133, %1 : vector<1x256xf32>
    %135 = arith.mulf %134, %16 : vector<1x256xf32>
    %136 = math.tanh %135 : vector<1x256xf32>
    %cst_45 = arith.constant 5.000000e-01 : f32
    %137 = vector.broadcast %cst_45 : f32 to vector<1x256xf32>
    %138 = arith.mulf %137, %136 : vector<1x256xf32>
    %cst_46 = arith.constant 5.000000e-01 : f32
    %139 = vector.broadcast %cst_46 : f32 to vector<1x256xf32>
    %140 = arith.addf %138, %139 : vector<1x256xf32>
    %141 = arith.select %13, %136, %140 : vector<1x256xi1>, vector<1x256xf32>
    %142 = vector.extract_strided_slice %141 {offsets = [0, 0], sizes = [1, 64], strides = [1, 1]} : vector<1x256xf32> to vector<1x64xf32>
    %143 = vector.extract_strided_slice %141 {offsets = [0, 64], sizes = [1, 64], strides = [1, 1]} : vector<1x256xf32> to vector<1x64xf32>
    %144 = vector.extract_strided_slice %141 {offsets = [0, 128], sizes = [1, 64], strides = [1, 1]} : vector<1x256xf32> to vector<1x64xf32>
    %145 = vector.extract_strided_slice %141 {offsets = [0, 192], sizes = [1, 64], strides = [1, 1]} : vector<1x256xf32> to vector<1x64xf32>
    %146 = arith.mulf %143, %106 : vector<1x64xf32>
    %147 = arith.mulf %142, %144 : vector<1x64xf32>
    %148 = arith.addf %146, %147 : vector<1x64xf32>
    %149 = math.tanh %148 : vector<1x64xf32>
    %150 = arith.mulf %145, %149 : vector<1x64xf32>
    %151 = arith.truncf %129 : vector<1x64xf32> to vector<1x64xbf16>
    %c16_47 = arith.constant 16 : index
    %c0_48 = arith.constant 0 : index
    %152 = vector.load %arg2[%c16_47, %c0_48] : memref<208x256xbf16, #tpu.memory_space<vmem>>, vector<64x256xbf16>
    %cst_49 = arith.constant dense<0.000000e+00> : vector<1x256xf32>
    %153 = tpu.matmul %151, %152, %cst_49 {dimension_numbers = #tpu.dot_dimension_numbers<[1], [0], [0], [1], [0, 0, 1, 1], [], []>} : vector<1x64xbf16>, vector<64x256xbf16>, vector<1x256xf32> -> vector<1x256xf32>
    %154 = vector.extract_strided_slice %7 {offsets = [3, 0], sizes = [1, 256], strides = [1, 1]} : vector<8x256xf32> to vector<1x256xf32>
    %155 = arith.addf %153, %154 : vector<1x256xf32>
    %156 = arith.mulf %155, %16 : vector<1x256xf32>
    %157 = math.tanh %156 : vector<1x256xf32>
    %cst_50 = arith.constant 5.000000e-01 : f32
    %158 = vector.broadcast %cst_50 : f32 to vector<1x256xf32>
    %159 = arith.mulf %158, %157 : vector<1x256xf32>
    %cst_51 = arith.constant 5.000000e-01 : f32
    %160 = vector.broadcast %cst_51 : f32 to vector<1x256xf32>
    %161 = arith.addf %159, %160 : vector<1x256xf32>
    %162 = arith.select %13, %157, %161 : vector<1x256xi1>, vector<1x256xf32>
    %163 = vector.extract_strided_slice %162 {offsets = [0, 0], sizes = [1, 64], strides = [1, 1]} : vector<1x256xf32> to vector<1x64xf32>
    %164 = vector.extract_strided_slice %162 {offsets = [0, 64], sizes = [1, 64], strides = [1, 1]} : vector<1x256xf32> to vector<1x64xf32>
    %165 = vector.extract_strided_slice %162 {offsets = [0, 128], sizes = [1, 64], strides = [1, 1]} : vector<1x256xf32> to vector<1x64xf32>
    %166 = vector.extract_strided_slice %162 {offsets = [0, 192], sizes = [1, 64], strides = [1, 1]} : vector<1x256xf32> to vector<1x64xf32>
    %167 = arith.mulf %164, %127 : vector<1x64xf32>
    %168 = arith.mulf %163, %165 : vector<1x64xf32>
    %169 = arith.addf %167, %168 : vector<1x64xf32>
    %170 = math.tanh %169 : vector<1x64xf32>
    %171 = arith.mulf %166, %170 : vector<1x64xf32>
    %172 = tpu.concatenate %171, %150 in 1 : vector<1x64xf32>, vector<1x64xf32> -> vector<1x128xf32>
    %173 = arith.truncf %172 : vector<1x128xf32> to vector<1x128xbf16>
    %c80_52 = arith.constant 80 : index
    %c0_53 = arith.constant 0 : index
    %174 = vector.load %arg2[%c80_52, %c0_53] : memref<208x256xbf16, #tpu.memory_space<vmem>>, vector<128x256xbf16>
    %cst_54 = arith.constant dense<0.000000e+00> : vector<1x256xf32>
    %175 = tpu.matmul %173, %174, %cst_54 {dimension_numbers = #tpu.dot_dimension_numbers<[1], [0], [0], [1], [0, 0, 1, 1], [], []>} : vector<1x128xbf16>, vector<128x256xbf16>, vector<1x256xf32> -> vector<1x256xf32>
    %176 = arith.addf %175, %1 : vector<1x256xf32>
    %177 = arith.mulf %176, %16 : vector<1x256xf32>
    %178 = math.tanh %177 : vector<1x256xf32>
    %cst_55 = arith.constant 5.000000e-01 : f32
    %179 = vector.broadcast %cst_55 : f32 to vector<1x256xf32>
    %180 = arith.mulf %179, %178 : vector<1x256xf32>
    %cst_56 = arith.constant 5.000000e-01 : f32
    %181 = vector.broadcast %cst_56 : f32 to vector<1x256xf32>
    %182 = arith.addf %180, %181 : vector<1x256xf32>
    %183 = arith.select %13, %178, %182 : vector<1x256xi1>, vector<1x256xf32>
    %184 = vector.extract_strided_slice %183 {offsets = [0, 0], sizes = [1, 64], strides = [1, 1]} : vector<1x256xf32> to vector<1x64xf32>
    %185 = vector.extract_strided_slice %183 {offsets = [0, 64], sizes = [1, 64], strides = [1, 1]} : vector<1x256xf32> to vector<1x64xf32>
    %186 = vector.extract_strided_slice %183 {offsets = [0, 128], sizes = [1, 64], strides = [1, 1]} : vector<1x256xf32> to vector<1x64xf32>
    %187 = vector.extract_strided_slice %183 {offsets = [0, 192], sizes = [1, 64], strides = [1, 1]} : vector<1x256xf32> to vector<1x64xf32>
    %188 = arith.mulf %185, %148 : vector<1x64xf32>
    %189 = arith.mulf %184, %186 : vector<1x64xf32>
    %190 = arith.addf %188, %189 : vector<1x64xf32>
    %191 = math.tanh %190 : vector<1x64xf32>
    %192 = arith.mulf %187, %191 : vector<1x64xf32>
    %193 = arith.truncf %171 : vector<1x64xf32> to vector<1x64xbf16>
    %c16_57 = arith.constant 16 : index
    %c0_58 = arith.constant 0 : index
    %194 = vector.load %arg2[%c16_57, %c0_58] : memref<208x256xbf16, #tpu.memory_space<vmem>>, vector<64x256xbf16>
    %cst_59 = arith.constant dense<0.000000e+00> : vector<1x256xf32>
    %195 = tpu.matmul %193, %194, %cst_59 {dimension_numbers = #tpu.dot_dimension_numbers<[1], [0], [0], [1], [0, 0, 1, 1], [], []>} : vector<1x64xbf16>, vector<64x256xbf16>, vector<1x256xf32> -> vector<1x256xf32>
    %196 = vector.extract_strided_slice %7 {offsets = [4, 0], sizes = [1, 256], strides = [1, 1]} : vector<8x256xf32> to vector<1x256xf32>
    %197 = arith.addf %195, %196 : vector<1x256xf32>
    %198 = arith.mulf %197, %16 : vector<1x256xf32>
    %199 = math.tanh %198 : vector<1x256xf32>
    %cst_60 = arith.constant 5.000000e-01 : f32
    %200 = vector.broadcast %cst_60 : f32 to vector<1x256xf32>
    %201 = arith.mulf %200, %199 : vector<1x256xf32>
    %cst_61 = arith.constant 5.000000e-01 : f32
    %202 = vector.broadcast %cst_61 : f32 to vector<1x256xf32>
    %203 = arith.addf %201, %202 : vector<1x256xf32>
    %204 = arith.select %13, %199, %203 : vector<1x256xi1>, vector<1x256xf32>
    %205 = vector.extract_strided_slice %204 {offsets = [0, 0], sizes = [1, 64], strides = [1, 1]} : vector<1x256xf32> to vector<1x64xf32>
    %206 = vector.extract_strided_slice %204 {offsets = [0, 64], sizes = [1, 64], strides = [1, 1]} : vector<1x256xf32> to vector<1x64xf32>
    %207 = vector.extract_strided_slice %204 {offsets = [0, 128], sizes = [1, 64], strides = [1, 1]} : vector<1x256xf32> to vector<1x64xf32>
    %208 = vector.extract_strided_slice %204 {offsets = [0, 192], sizes = [1, 64], strides = [1, 1]} : vector<1x256xf32> to vector<1x64xf32>
    %209 = arith.mulf %206, %169 : vector<1x64xf32>
    %210 = arith.mulf %205, %207 : vector<1x64xf32>
    %211 = arith.addf %209, %210 : vector<1x64xf32>
    %212 = math.tanh %211 : vector<1x64xf32>
    %213 = arith.mulf %208, %212 : vector<1x64xf32>
    %214 = tpu.concatenate %213, %192 in 1 : vector<1x64xf32>, vector<1x64xf32> -> vector<1x128xf32>
    %215 = arith.truncf %214 : vector<1x128xf32> to vector<1x128xbf16>
    %c80_62 = arith.constant 80 : index
    %c0_63 = arith.constant 0 : index
    %216 = vector.load %arg2[%c80_62, %c0_63] : memref<208x256xbf16, #tpu.memory_space<vmem>>, vector<128x256xbf16>
    %cst_64 = arith.constant dense<0.000000e+00> : vector<1x256xf32>
    %217 = tpu.matmul %215, %216, %cst_64 {dimension_numbers = #tpu.dot_dimension_numbers<[1], [0], [0], [1], [0, 0, 1, 1], [], []>} : vector<1x128xbf16>, vector<128x256xbf16>, vector<1x256xf32> -> vector<1x256xf32>
    %218 = arith.addf %217, %1 : vector<1x256xf32>
    %219 = arith.mulf %218, %16 : vector<1x256xf32>
    %220 = math.tanh %219 : vector<1x256xf32>
    %cst_65 = arith.constant 5.000000e-01 : f32
    %221 = vector.broadcast %cst_65 : f32 to vector<1x256xf32>
    %222 = arith.mulf %221, %220 : vector<1x256xf32>
    %cst_66 = arith.constant 5.000000e-01 : f32
    %223 = vector.broadcast %cst_66 : f32 to vector<1x256xf32>
    %224 = arith.addf %222, %223 : vector<1x256xf32>
    %225 = arith.select %13, %220, %224 : vector<1x256xi1>, vector<1x256xf32>
    %226 = vector.extract_strided_slice %225 {offsets = [0, 0], sizes = [1, 64], strides = [1, 1]} : vector<1x256xf32> to vector<1x64xf32>
    %227 = vector.extract_strided_slice %225 {offsets = [0, 64], sizes = [1, 64], strides = [1, 1]} : vector<1x256xf32> to vector<1x64xf32>
    %228 = vector.extract_strided_slice %225 {offsets = [0, 128], sizes = [1, 64], strides = [1, 1]} : vector<1x256xf32> to vector<1x64xf32>
    %229 = vector.extract_strided_slice %225 {offsets = [0, 192], sizes = [1, 64], strides = [1, 1]} : vector<1x256xf32> to vector<1x64xf32>
    %230 = arith.mulf %227, %190 : vector<1x64xf32>
    %231 = arith.mulf %226, %228 : vector<1x64xf32>
    %232 = arith.addf %230, %231 : vector<1x64xf32>
    %233 = math.tanh %232 : vector<1x64xf32>
    %234 = arith.mulf %229, %233 : vector<1x64xf32>
    %235 = arith.truncf %213 : vector<1x64xf32> to vector<1x64xbf16>
    %c16_67 = arith.constant 16 : index
    %c0_68 = arith.constant 0 : index
    %236 = vector.load %arg2[%c16_67, %c0_68] : memref<208x256xbf16, #tpu.memory_space<vmem>>, vector<64x256xbf16>
    %cst_69 = arith.constant dense<0.000000e+00> : vector<1x256xf32>
    %237 = tpu.matmul %235, %236, %cst_69 {dimension_numbers = #tpu.dot_dimension_numbers<[1], [0], [0], [1], [0, 0, 1, 1], [], []>} : vector<1x64xbf16>, vector<64x256xbf16>, vector<1x256xf32> -> vector<1x256xf32>
    %238 = vector.extract_strided_slice %7 {offsets = [5, 0], sizes = [1, 256], strides = [1, 1]} : vector<8x256xf32> to vector<1x256xf32>
    %239 = arith.addf %237, %238 : vector<1x256xf32>
    %240 = arith.mulf %239, %16 : vector<1x256xf32>
    %241 = math.tanh %240 : vector<1x256xf32>
    %cst_70 = arith.constant 5.000000e-01 : f32
    %242 = vector.broadcast %cst_70 : f32 to vector<1x256xf32>
    %243 = arith.mulf %242, %241 : vector<1x256xf32>
    %cst_71 = arith.constant 5.000000e-01 : f32
    %244 = vector.broadcast %cst_71 : f32 to vector<1x256xf32>
    %245 = arith.addf %243, %244 : vector<1x256xf32>
    %246 = arith.select %13, %241, %245 : vector<1x256xi1>, vector<1x256xf32>
    %247 = vector.extract_strided_slice %246 {offsets = [0, 0], sizes = [1, 64], strides = [1, 1]} : vector<1x256xf32> to vector<1x64xf32>
    %248 = vector.extract_strided_slice %246 {offsets = [0, 64], sizes = [1, 64], strides = [1, 1]} : vector<1x256xf32> to vector<1x64xf32>
    %249 = vector.extract_strided_slice %246 {offsets = [0, 128], sizes = [1, 64], strides = [1, 1]} : vector<1x256xf32> to vector<1x64xf32>
    %250 = vector.extract_strided_slice %246 {offsets = [0, 192], sizes = [1, 64], strides = [1, 1]} : vector<1x256xf32> to vector<1x64xf32>
    %251 = arith.mulf %248, %211 : vector<1x64xf32>
    %252 = arith.mulf %247, %249 : vector<1x64xf32>
    %253 = arith.addf %251, %252 : vector<1x64xf32>
    %254 = math.tanh %253 : vector<1x64xf32>
    %255 = arith.mulf %250, %254 : vector<1x64xf32>
    %256 = tpu.concatenate %255, %234 in 1 : vector<1x64xf32>, vector<1x64xf32> -> vector<1x128xf32>
    %257 = arith.truncf %256 : vector<1x128xf32> to vector<1x128xbf16>
    %c80_72 = arith.constant 80 : index
    %c0_73 = arith.constant 0 : index
    %258 = vector.load %arg2[%c80_72, %c0_73] : memref<208x256xbf16, #tpu.memory_space<vmem>>, vector<128x256xbf16>
    %cst_74 = arith.constant dense<0.000000e+00> : vector<1x256xf32>
    %259 = tpu.matmul %257, %258, %cst_74 {dimension_numbers = #tpu.dot_dimension_numbers<[1], [0], [0], [1], [0, 0, 1, 1], [], []>} : vector<1x128xbf16>, vector<128x256xbf16>, vector<1x256xf32> -> vector<1x256xf32>
    %260 = arith.addf %259, %1 : vector<1x256xf32>
    %261 = arith.mulf %260, %16 : vector<1x256xf32>
    %262 = math.tanh %261 : vector<1x256xf32>
    %cst_75 = arith.constant 5.000000e-01 : f32
    %263 = vector.broadcast %cst_75 : f32 to vector<1x256xf32>
    %264 = arith.mulf %263, %262 : vector<1x256xf32>
    %cst_76 = arith.constant 5.000000e-01 : f32
    %265 = vector.broadcast %cst_76 : f32 to vector<1x256xf32>
    %266 = arith.addf %264, %265 : vector<1x256xf32>
    %267 = arith.select %13, %262, %266 : vector<1x256xi1>, vector<1x256xf32>
    %268 = vector.extract_strided_slice %267 {offsets = [0, 0], sizes = [1, 64], strides = [1, 1]} : vector<1x256xf32> to vector<1x64xf32>
    %269 = vector.extract_strided_slice %267 {offsets = [0, 64], sizes = [1, 64], strides = [1, 1]} : vector<1x256xf32> to vector<1x64xf32>
    %270 = vector.extract_strided_slice %267 {offsets = [0, 128], sizes = [1, 64], strides = [1, 1]} : vector<1x256xf32> to vector<1x64xf32>
    %271 = vector.extract_strided_slice %267 {offsets = [0, 192], sizes = [1, 64], strides = [1, 1]} : vector<1x256xf32> to vector<1x64xf32>
    %272 = arith.mulf %269, %232 : vector<1x64xf32>
    %273 = arith.mulf %268, %270 : vector<1x64xf32>
    %274 = arith.addf %272, %273 : vector<1x64xf32>
    %275 = math.tanh %274 : vector<1x64xf32>
    %276 = arith.mulf %271, %275 : vector<1x64xf32>
    %277 = arith.truncf %255 : vector<1x64xf32> to vector<1x64xbf16>
    %c16_77 = arith.constant 16 : index
    %c0_78 = arith.constant 0 : index
    %278 = vector.load %arg2[%c16_77, %c0_78] : memref<208x256xbf16, #tpu.memory_space<vmem>>, vector<64x256xbf16>
    %cst_79 = arith.constant dense<0.000000e+00> : vector<1x256xf32>
    %279 = tpu.matmul %277, %278, %cst_79 {dimension_numbers = #tpu.dot_dimension_numbers<[1], [0], [0], [1], [0, 0, 1, 1], [], []>} : vector<1x64xbf16>, vector<64x256xbf16>, vector<1x256xf32> -> vector<1x256xf32>
    %280 = vector.extract_strided_slice %7 {offsets = [6, 0], sizes = [1, 256], strides = [1, 1]} : vector<8x256xf32> to vector<1x256xf32>
    %281 = arith.addf %279, %280 : vector<1x256xf32>
    %282 = arith.mulf %281, %16 : vector<1x256xf32>
    %283 = math.tanh %282 : vector<1x256xf32>
    %cst_80 = arith.constant 5.000000e-01 : f32
    %284 = vector.broadcast %cst_80 : f32 to vector<1x256xf32>
    %285 = arith.mulf %284, %283 : vector<1x256xf32>
    %cst_81 = arith.constant 5.000000e-01 : f32
    %286 = vector.broadcast %cst_81 : f32 to vector<1x256xf32>
    %287 = arith.addf %285, %286 : vector<1x256xf32>
    %288 = arith.select %13, %283, %287 : vector<1x256xi1>, vector<1x256xf32>
    %289 = vector.extract_strided_slice %288 {offsets = [0, 0], sizes = [1, 64], strides = [1, 1]} : vector<1x256xf32> to vector<1x64xf32>
    %290 = vector.extract_strided_slice %288 {offsets = [0, 64], sizes = [1, 64], strides = [1, 1]} : vector<1x256xf32> to vector<1x64xf32>
    %291 = vector.extract_strided_slice %288 {offsets = [0, 128], sizes = [1, 64], strides = [1, 1]} : vector<1x256xf32> to vector<1x64xf32>
    %292 = vector.extract_strided_slice %288 {offsets = [0, 192], sizes = [1, 64], strides = [1, 1]} : vector<1x256xf32> to vector<1x64xf32>
    %293 = arith.mulf %290, %253 : vector<1x64xf32>
    %294 = arith.mulf %289, %291 : vector<1x64xf32>
    %295 = arith.addf %293, %294 : vector<1x64xf32>
    %296 = math.tanh %295 : vector<1x64xf32>
    %297 = arith.mulf %292, %296 : vector<1x64xf32>
    %298 = tpu.concatenate %297, %276 in 1 : vector<1x64xf32>, vector<1x64xf32> -> vector<1x128xf32>
    %299 = arith.truncf %298 : vector<1x128xf32> to vector<1x128xbf16>
    %c80_82 = arith.constant 80 : index
    %c0_83 = arith.constant 0 : index
    %300 = vector.load %arg2[%c80_82, %c0_83] : memref<208x256xbf16, #tpu.memory_space<vmem>>, vector<128x256xbf16>
    %cst_84 = arith.constant dense<0.000000e+00> : vector<1x256xf32>
    %301 = tpu.matmul %299, %300, %cst_84 {dimension_numbers = #tpu.dot_dimension_numbers<[1], [0], [0], [1], [0, 0, 1, 1], [], []>} : vector<1x128xbf16>, vector<128x256xbf16>, vector<1x256xf32> -> vector<1x256xf32>
    %302 = arith.addf %301, %1 : vector<1x256xf32>
    %303 = arith.mulf %302, %16 : vector<1x256xf32>
    %304 = math.tanh %303 : vector<1x256xf32>
    %cst_85 = arith.constant 5.000000e-01 : f32
    %305 = vector.broadcast %cst_85 : f32 to vector<1x256xf32>
    %306 = arith.mulf %305, %304 : vector<1x256xf32>
    %cst_86 = arith.constant 5.000000e-01 : f32
    %307 = vector.broadcast %cst_86 : f32 to vector<1x256xf32>
    %308 = arith.addf %306, %307 : vector<1x256xf32>
    %309 = arith.select %13, %304, %308 : vector<1x256xi1>, vector<1x256xf32>
    %310 = vector.extract_strided_slice %309 {offsets = [0, 0], sizes = [1, 64], strides = [1, 1]} : vector<1x256xf32> to vector<1x64xf32>
    %311 = vector.extract_strided_slice %309 {offsets = [0, 64], sizes = [1, 64], strides = [1, 1]} : vector<1x256xf32> to vector<1x64xf32>
    %312 = vector.extract_strided_slice %309 {offsets = [0, 128], sizes = [1, 64], strides = [1, 1]} : vector<1x256xf32> to vector<1x64xf32>
    %313 = vector.extract_strided_slice %309 {offsets = [0, 192], sizes = [1, 64], strides = [1, 1]} : vector<1x256xf32> to vector<1x64xf32>
    %314 = arith.mulf %311, %274 : vector<1x64xf32>
    %315 = arith.mulf %310, %312 : vector<1x64xf32>
    %316 = arith.addf %314, %315 : vector<1x64xf32>
    %317 = math.tanh %316 : vector<1x64xf32>
    %318 = arith.mulf %313, %317 : vector<1x64xf32>
    %319 = arith.truncf %297 : vector<1x64xf32> to vector<1x64xbf16>
    %c16_87 = arith.constant 16 : index
    %c0_88 = arith.constant 0 : index
    %320 = vector.load %arg2[%c16_87, %c0_88] : memref<208x256xbf16, #tpu.memory_space<vmem>>, vector<64x256xbf16>
    %cst_89 = arith.constant dense<0.000000e+00> : vector<1x256xf32>
    %321 = tpu.matmul %319, %320, %cst_89 {dimension_numbers = #tpu.dot_dimension_numbers<[1], [0], [0], [1], [0, 0, 1, 1], [], []>} : vector<1x64xbf16>, vector<64x256xbf16>, vector<1x256xf32> -> vector<1x256xf32>
    %322 = vector.extract_strided_slice %7 {offsets = [7, 0], sizes = [1, 256], strides = [1, 1]} : vector<8x256xf32> to vector<1x256xf32>
    %323 = arith.addf %321, %322 : vector<1x256xf32>
    %324 = arith.mulf %323, %16 : vector<1x256xf32>
    %325 = math.tanh %324 : vector<1x256xf32>
    %cst_90 = arith.constant 5.000000e-01 : f32
    %326 = vector.broadcast %cst_90 : f32 to vector<1x256xf32>
    %327 = arith.mulf %326, %325 : vector<1x256xf32>
    %cst_91 = arith.constant 5.000000e-01 : f32
    %328 = vector.broadcast %cst_91 : f32 to vector<1x256xf32>
    %329 = arith.addf %327, %328 : vector<1x256xf32>
    %330 = arith.select %13, %325, %329 : vector<1x256xi1>, vector<1x256xf32>
    %331 = vector.extract_strided_slice %330 {offsets = [0, 0], sizes = [1, 64], strides = [1, 1]} : vector<1x256xf32> to vector<1x64xf32>
    %332 = vector.extract_strided_slice %330 {offsets = [0, 64], sizes = [1, 64], strides = [1, 1]} : vector<1x256xf32> to vector<1x64xf32>
    %333 = vector.extract_strided_slice %330 {offsets = [0, 128], sizes = [1, 64], strides = [1, 1]} : vector<1x256xf32> to vector<1x64xf32>
    %334 = vector.extract_strided_slice %330 {offsets = [0, 192], sizes = [1, 64], strides = [1, 1]} : vector<1x256xf32> to vector<1x64xf32>
    %335 = arith.mulf %332, %295 : vector<1x64xf32>
    %336 = arith.mulf %331, %333 : vector<1x64xf32>
    %337 = arith.addf %335, %336 : vector<1x64xf32>
    %338 = math.tanh %337 : vector<1x64xf32>
    %339 = arith.mulf %334, %338 : vector<1x64xf32>
    %340 = tpu.concatenate %339, %318 in 1 : vector<1x64xf32>, vector<1x64xf32> -> vector<1x128xf32>
    %341 = arith.truncf %340 : vector<1x128xf32> to vector<1x128xbf16>
    %c80_92 = arith.constant 80 : index
    %c0_93 = arith.constant 0 : index
    %342 = vector.load %arg2[%c80_92, %c0_93] : memref<208x256xbf16, #tpu.memory_space<vmem>>, vector<128x256xbf16>
    %cst_94 = arith.constant dense<0.000000e+00> : vector<1x256xf32>
    %343 = tpu.matmul %341, %342, %cst_94 {dimension_numbers = #tpu.dot_dimension_numbers<[1], [0], [0], [1], [0, 0, 1, 1], [], []>} : vector<1x128xbf16>, vector<128x256xbf16>, vector<1x256xf32> -> vector<1x256xf32>
    %344 = arith.addf %343, %1 : vector<1x256xf32>
    %345 = arith.mulf %344, %16 : vector<1x256xf32>
    %346 = math.tanh %345 : vector<1x256xf32>
    %cst_95 = arith.constant 5.000000e-01 : f32
    %347 = vector.broadcast %cst_95 : f32 to vector<1x256xf32>
    %348 = arith.mulf %347, %346 : vector<1x256xf32>
    %cst_96 = arith.constant 5.000000e-01 : f32
    %349 = vector.broadcast %cst_96 : f32 to vector<1x256xf32>
    %350 = arith.addf %348, %349 : vector<1x256xf32>
    %351 = arith.select %13, %346, %350 : vector<1x256xi1>, vector<1x256xf32>
    %352 = vector.extract_strided_slice %351 {offsets = [0, 0], sizes = [1, 64], strides = [1, 1]} : vector<1x256xf32> to vector<1x64xf32>
    %353 = vector.extract_strided_slice %351 {offsets = [0, 64], sizes = [1, 64], strides = [1, 1]} : vector<1x256xf32> to vector<1x64xf32>
    %354 = vector.extract_strided_slice %351 {offsets = [0, 128], sizes = [1, 64], strides = [1, 1]} : vector<1x256xf32> to vector<1x64xf32>
    %355 = vector.extract_strided_slice %351 {offsets = [0, 192], sizes = [1, 64], strides = [1, 1]} : vector<1x256xf32> to vector<1x64xf32>
    %356 = arith.mulf %353, %316 : vector<1x64xf32>
    %357 = arith.mulf %352, %354 : vector<1x64xf32>
    %358 = arith.addf %356, %357 : vector<1x64xf32>
    %359 = math.tanh %358 : vector<1x64xf32>
    %360 = arith.mulf %355, %359 : vector<1x64xf32>
    %c2 = arith.constant 2 : index
    %c0_97 = arith.constant 0 : index
    %361 = vector.load %arg3[%c2, %c0_97] : memref<4x256xf32, #tpu.memory_space<vmem>>, vector<1x64xf32>
    %c3 = arith.constant 3 : index
    %c0_98 = arith.constant 0 : index
    %362 = vector.load %arg3[%c3, %c0_98] : memref<4x256xf32, #tpu.memory_space<vmem>>, vector<1x1xf32>
    %363 = arith.mulf %360, %361 : vector<1x64xf32>
    %cst_99 = arith.constant dense<0.000000e+00> : vector<1xf32>
    %364 = vector.multi_reduction <add>, %363, %cst_99 [1] : vector<1x64xf32> to vector<1xf32>
    %365 = vector.shape_cast %364 : vector<1xf32> to vector<1x1xf32>
    %366 = arith.addf %365, %362 : vector<1x1xf32>
    %c0_100 = arith.constant 0 : index
    %c0_101 = arith.constant 0 : index
    %367 = vector.load %arg4[%c0_100, %c0_101] : memref<1x1xf32, #tpu.memory_space<vmem>>, vector<1x1xf32>
    tpu.vector_store %arg4[%c0_100, %c0_101], %366 {strides = array<i32>} : memref<1x1xf32, #tpu.memory_space<vmem>>, vector<1x1xf32>,
    %368 = tpu.concatenate %339, %337 in 1 : vector<1x64xf32>, vector<1x64xf32> -> vector<1x128xf32>
    %c0_102 = arith.constant 0 : index
    %c0_103 = arith.constant 0 : index
    %c0_104 = arith.constant 0 : index
    %369 = vector.load %arg5[%c0_102, %c0_103, %c0_104] : memref<2x1x128xf32, #tpu.memory_space<vmem>>, vector<1x1x128xf32>
    %370 = vector.shape_cast %369 : vector<1x1x128xf32> to vector<1x128xf32>
    %371 = vector.shape_cast %368 : vector<1x128xf32> to vector<1x1x128xf32>
    tpu.vector_store %arg5[%c0_102, %c0_103, %c0_104], %371 {strides = array<i32>} : memref<2x1x128xf32, #tpu.memory_space<vmem>>, vector<1x1x128xf32>,
    %372 = tpu.concatenate %360, %358 in 1 : vector<1x64xf32>, vector<1x64xf32> -> vector<1x128xf32>
    %c1_105 = arith.constant 1 : index
    %c0_106 = arith.constant 0 : index
    %c0_107 = arith.constant 0 : index
    %373 = vector.load %arg5[%c1_105, %c0_106, %c0_107] : memref<2x1x128xf32, #tpu.memory_space<vmem>>, vector<1x1x128xf32>
    %374 = vector.shape_cast %373 : vector<1x1x128xf32> to vector<1x128xf32>
    %375 = vector.shape_cast %372 : vector<1x128xf32> to vector<1x1x128xf32>
    tpu.vector_store %arg5[%c1_105, %c0_106, %c0_107], %375 {strides = array<i32>} : memref<2x1x128xf32, #tpu.memory_space<vmem>>, vector<1x1x128xf32>,
    return
  }
}

</mosaic_0001>

<llo_original>
// kernel: lstm_forward.1
$region0: #{lstm_forward.1}
  #allocation0 [shape = 'u32[]', space=smem, size = 0x4, offset = 0x4, fixed_abs, tag = 'smem constant byte address 0x4 - core index']
  #allocation1 [shape = 'u32[144,128]{1,0:T(1,128)}', space=vmem, size = 0x12000, scoped, tag = 'internal scratch']
  %s0 = inlined_call_operand.vmem [shape: f32[8,14], index: 0, kind: input, shape index: {}]
  %s1 = inlined_call_operand.vmem [shape: f32[2,1,128], index: 1, kind: input, shape index: {}]
  %s2 = inlined_call_operand.hbm [shape: bf16[208,256], index: 2, kind: input, shape index: {}]
  %s3 = inlined_call_operand.vmem [shape: f32[4,256], index: 3, kind: input, shape index: {}]
  %s4 = inlined_call_operand.hbm [shape: f32[1,1], index: 4, kind: output, shape index: {0}]
  %s5 = inlined_call_operand.vmem [shape: f32[2,1,128], index: 5, kind: output, shape index: {1}]
  %6 = xla_tuple %s4, %s5
  %s7 = sld [smem:[#allocation0]]
  $region38: #{lstm_forward.1} parent=0
    _
  %s9 = ssub.s32 1, %s7
  %s10 = scalar_select 0, %s9, %s7
  $region1: #{lstm_forward.1} parent=0
    #allocation2 [shape = 'u8[106496]{0}', space=vmem, size = 0x1a000, scoped, tag = 'input window, operand 2, single buffered']
    #allocation3 [shape = 's32[1]{0}', space=sflag, size = 0x4, scoped, tag = 'scoped memory for lstm_forward.1']
    #allocation4 [shape = 's32[1]{0}', space=sflag, size = 0x4, scoped, tag = 'scoped memory for lstm_forward.1']
    #allocation5 [shape = 'u8[512]{0}', space=vmem, size = 0x400, scoped, tag = 'output window, operand 0, single buffered']
    %11 = vsyncpa [#allocation3], 0
    %12 = vsyncpa [#allocation4], 0
    // Predicated region
    $region2: #{lstm_forward.1} parent=1 // pred_check
      _
    $region3: #{lstm_forward.1} parent=1 // pred_check_branch
      %14 = sbr.rel (0) target = $region5
    $region4: #{lstm_forward.1} parent=1 // pred_region
      _
    $region5: #{lstm_forward.1} parent=1 // pred_fallthru
      _
    // Predicated region
    $region6: #{lstm_forward.1} parent=1 // pred_check
      _
    $region7: #{lstm_forward.1} parent=1 // pred_check_branch
      %16 = sbr.rel (0) target = $region9
    $region8: #{lstm_forward.1} parent=1 // pred_region
      _
    $region9: #{lstm_forward.1} parent=1 // pred_fallthru
      _
    // Predicated region
    $region10: #{lstm_forward.1} parent=1 // pred_check
      _
    $region11: #{lstm_forward.1} parent=1 // pred_check_branch
      %18 = sbr.rel (0) target = $region13
    $region12: #{lstm_forward.1} parent=1 // pred_region
      %s20 = ssub.s32 3328, 3328
      %21 = vsyncadd [#allocation3], %s20
      %s22 = sshll.u32 [#allocation2], 4
      %s23 = int_to_ptr.vmem [resolvable:$true] %s22
      %28 = dma.hbm_to_vmem [thread:$0]  %s2, 3328, %s23, [#allocation3], 128, 128, 8
    $region13: #{lstm_forward.1} parent=1 // pred_fallthru
      _
    // Predicated region
    $region14: #{lstm_forward.1} parent=1 // pred_check
      _
    $region15: #{lstm_forward.1} parent=1 // pred_check_branch
      %30 = sbr.rel (0) target = $region17
    $region16: #{lstm_forward.1} parent=1 // pred_region
      _
    $region17: #{lstm_forward.1} parent=1 // pred_fallthru
      _
    // Predicated region
    $region18: #{lstm_forward.1} parent=1 // pred_check
      _
    $region19: #{lstm_forward.1} parent=1 // pred_check_branch
      %32 = sbr.rel (0) target = $region21
    $region20: #{lstm_forward.1} parent=1 // pred_region
      %33 = dma.done [#allocation3], 3328
    $region21: #{lstm_forward.1} parent=1 // pred_fallthru
      _
    %v35 = vld [vmem:[%s3] ss:$4 sm:$0x3]
    %s36 = scalar_lea.vmem %s3, 1
    %v37 = vld [vmem:[%s36] ss:$4 sm:$0x3]
    %v38 = vld [vmem:[%s0] sm:$0xff]
    %v39 = vpack.c.bf16 %v38, %v38
    %v40 = vld [vmem:[#allocation2] sm:$0xff]
    %v41 = vld [vmem:[#allocation2 + $0x8] sm:$0x77]
    %v43 = vlaneseq
    %v44 = vshrl.u32 %v43, 7
    %v45 = vsub.s32 0, %v44
    %v46 = vrot.slane %v35, %v45
    %v47 = vlaneseq
    %v48 = vshrl.u32 %v47, 7
    %v49 = vsub.s32 1, %v48
    %v50 = vrot.slane %v35, %v49
    %v55 = vunpack.c.l.b16 %v40
    %v56 = vunpack.c.h.b16 %v40
    %v57 = vunpack.c.l.b16 %v41
    %v58 = vunpack.c.h.b16 %v41
    %v59 = vpack.c.b16 %v57, %v55
    %v60 = vpack.c.b16 %v58, %v56
    %vm61 = vcmask 113664
    %v63 = vsel %vm61, %v39, 0
    %vm65 = vcmask 1046528
    %v67 = vsel %vm65, %v59, 0
    %v70 = vsel %vm65, %v60, 0
    %72 = vmatprep.subr.bf16.mxu0 %v70
    %73 = vmatpush1.bf16.msra.mxu0 %v67
    %74 = vmatprep.subr.bf16.mxu0 0
    %75 = vmatpush1.bf16.msra.mxu0 0
    %76 = vmatprep.subr.bf16.mxu0 0
    %77 = vmatpush1.bf16.msra.mxu0 0
    %78 = vmatprep.subr.bf16.mxu0 0
    %79 = vmatpush1.bf16.msra.mxu0 0
    %80 = vmatprep.subr.bf16.mxu0 0
    %81 = vmatpush1.bf16.msra.mxu0 0
    %82 = vmatprep.subr.bf16.mxu0 0
    %83 = vmatpush1.bf16.msra.mxu0 0
    %84 = vmatprep.subr.bf16.mxu0 0
    %85 = vmatpush1.bf16.msra.mxu0 0
    %86 = vmatprep.subr.bf16.mxu0 0
    %87 = vmatpush1.bf16.msra.mxu0 0
    %88 = vmatprep.subr.bf16.mxu0 0
    %89 = vmatpush1.bf16.msra.mxu0 0
    %90 = vmatprep.subr.bf16.mxu0 0
    %91 = vmatpush1.bf16.msra.mxu0 0
    %92 = vmatprep.subr.bf16.mxu0 0
    %93 = vmatpush1.bf16.msra.mxu0 0
    %94 = vmatprep.subr.bf16.mxu0 0
    %95 = vmatpush1.bf16.msra.mxu0 0
    %96 = vmatprep.subr.bf16.mxu0 0
    %97 = vmatpush1.bf16.msra.mxu0 0
    %98 = vmatprep.subr.bf16.mxu0 0
    %99 = vmatpush1.bf16.msra.mxu0 0
    %100 = vmatprep.subr.bf16.mxu0 0
    %101 = vmatpush1.bf16.msra.mxu0 0
    %102 = vmatprep.subr.bf16.mxu0 0
    %103 = vmatpush1.bf16.msra.mxu0 0
    %104 = vmatprep.mubr.bf16.mxu0 0
    %105 = vmatmul.mubr.bf16.gmra.mrb[0].mxu0 %v63
    %v106 = vpop.f32.mrb[0].mxu0
    %v107 = vadd.f32 %v46, %v106
    %v108 = vpop.f32.mrb[0].mxu0
    %v109 = vadd.f32 %v50, %v108
    %v110 = vpop.f32.mrb[0].mxu0
    %v111 = vpop.f32.mrb[0].mxu0
    %112 = vdwg.mxu0
    %v113 = vlaneseq
    %v114 = vand.u32 %v113, 127
    %v115 = vadd.s32 %v114, 128
    %vm116 = vcmp.ge.s32.totalorder %v114, 128
    %vm117 = vcmp.ge.s32.totalorder %v115, 128
    %vm118 = vcmp.lt.s32.totalorder %v114, 192
    %vm119 = vcmp.lt.s32.totalorder %v115, 192
    %vm120 = vmand %vm116, %vm118
    %vm121 = vmand %vm117, %vm119
    %v122 = vsel %vm120, 1.0, 0.5
    %v123 = vsel %vm121, 1.0, 0.5
    %v124 = vld [vmem:[%s1] sm:$0x1]
    %s125 = scalar_lea.vmem %s1, 1
    %v126 = vld [vmem:[%s125] sm:$0x1]
    %v127 = vpack.c.bf16 %v124, %v124
    %v128 = vld [vmem:[#allocation2 + $0x10] sm:$0xff]
    %v129 = vld [vmem:[#allocation2 + $0x18] sm:$0xff]
    %v130 = vld [vmem:[#allocation2 + $0x20] sm:$0xff]
    %v131 = vld [vmem:[#allocation2 + $0x28] sm:$0xff]
    %v132 = vld [vmem:[#allocation2 + $0x30] sm:$0xff]
    %v133 = vld [vmem:[#allocation2 + $0x38] sm:$0xff]
    %v134 = vld [vmem:[#allocation2 + $0x40] sm:$0xff]
    %v135 = vld [vmem:[#allocation2 + $0x48] sm:$0xff]
    %v144 = vunpack.c.l.b16 %v128
    %v145 = vunpack.c.h.b16 %v128
    %v146 = vunpack.c.l.b16 %v129
    %v147 = vunpack.c.h.b16 %v129
    %v148 = vunpack.c.l.b16 %v130
    %v149 = vunpack.c.h.b16 %v130
    %v150 = vunpack.c.l.b16 %v131
    %v151 = vunpack.c.h.b16 %v131
    %v152 = vunpack.c.l.b16 %v132
    %v153 = vunpack.c.h.b16 %v132
    %v154 = vunpack.c.l.b16 %v133
    %v155 = vunpack.c.h.b16 %v133
    %v156 = vunpack.c.l.b16 %v134
    %v157 = vunpack.c.h.b16 %v134
    %v158 = vunpack.c.l.b16 %v135
    %v159 = vunpack.c.h.b16 %v135
    %v160 = vpack.c.b16 %v146, %v144
    %v161 = vpack.c.b16 %v147, %v145
    %v162 = vpack.c.b16 %v150, %v148
    %v163 = vpack.c.b16 %v151, %v149
    %v164 = vpack.c.b16 %v154, %v152
    %v165 = vpack.c.b16 %v155, %v153
    %v166 = vpack.c.b16 %v158, %v156
    %v167 = vpack.c.b16 %v159, %v157
    %vm176 = vcmask 523264
    %v178 = vsel %vm176, %v127, 0
    %180 = vmatprep.subr.bf16.mxu0 %v161
    %181 = vmatpush1.bf16.msra.mxu0 %v160
    %182 = vmatprep.subr.bf16.mxu0 %v163
    %183 = vmatpush1.bf16.msra.mxu0 %v162
    %184 = vmatprep.subr.bf16.mxu0 %v165
    %185 = vmatpush1.bf16.msra.mxu0 %v164
    %186 = vmatprep.subr.bf16.mxu0 %v167
    %187 = vmatpush1.bf16.msra.mxu0 %v166
    %188 = vmatprep.subr.bf16.mxu0 0
    %189 = vmatpush1.bf16.msra.mxu0 0
    %190 = vmatprep.subr.bf16.mxu0 0
    %191 = vmatpush1.bf16.msra.mxu0 0
    %192 = vmatprep.subr.bf16.mxu0 0
    %193 = vmatpush1.bf16.msra.mxu0 0
    %194 = vmatprep.subr.bf16.mxu0 0
    %195 = vmatpush1.bf16.msra.mxu0 0
    %196 = vmatprep.subr.bf16.mxu0 0
    %197 = vmatpush1.bf16.msra.mxu0 0
    %198 = vmatprep.subr.bf16.mxu0 0
    %199 = vmatpush1.bf16.msra.mxu0 0
    %200 = vmatprep.subr.bf16.mxu0 0
    %201 = vmatpush1.bf16.msra.mxu0 0
    %202 = vmatprep.subr.bf16.mxu0 0
    %203 = vmatpush1.bf16.msra.mxu0 0
    %204 = vmatprep.subr.bf16.mxu0 0
    %205 = vmatpush1.bf16.msra.mxu0 0
    %206 = vmatprep.subr.bf16.mxu0 0
    %207 = vmatpush1.bf16.msra.mxu0 0
    %208 = vmatprep.subr.bf16.mxu0 0
    %209 = vmatpush1.bf16.msra.mxu0 0
    %210 = vmatprep.subr.bf16.mxu0 0
    %211 = vmatpush1.bf16.msra.mxu0 0
    %212 = vmatprep.mubr.bf16.mxu0 0
    %213 = vmatmul.mubr.bf16.gmra.mrb[0].mxu0 %v178
    %v214 = vpop.f32.mrb[0].mxu0
    %v215 = vadd.f32 %v107, %v214
    %v216 = vpop.f32.mrb[0].mxu0
    %v217 = vadd.f32 %v109, %v216
    %v218 = vpop.f32.mrb[0].mxu0
    %v219 = vpop.f32.mrb[0].mxu0
    %220 = vdwg.mxu0
    %v221 = vmul.f32 %v215, %v122
    %v222 = vmul.f32 %v217, %v123
    %v223 = vtanh.pop %v221
    %v224 = vtanh.pop %v222
    %v225 = vmul.f32 %v223, 0.5
    %v226 = vmul.f32 %v224, 0.5
    %v227 = vadd.f32 %v225, 0.5
    %v228 = vadd.f32 %v226, 0.5
    %v229 = vsel %vm120, %v223, %v227
    %v230 = vsel %vm121, %v224, %v228
    %v231 = vmul.f32 %v229, %v124
    %v232 = vmul.f32 %v229, %v230
    %234 = vrot.lane.b32.xlu0 %v232, 64
    %v235 = vpop.permute.xlu0 %234
    %v237 = vadd.f32 %v231, %v235
    %v238 = vtanh.pop %v237
    %v239 = vmul.f32 %v230, %v238
    %241 = vrot.lane.b32.xlu0 %v239, 64
    %v242 = vpop.permute.xlu0 %241
    %v245 = vlaneseq
    %v246 = vshrl.u32 %v245, 7
    %v247 = vsub.s32 0, %v246
    %v248 = vrot.slane %v126, %v247
    %249 = vrot.lane.b32.xlu0 %v248, 64
    %v250 = vpop.permute.xlu0 %249
    %v252 = vsel %vm176, %v242, %v250
    %v253 = vpack.c.bf16 %v252, %v252
    %v254 = vld [vmem:[#allocation2 + $0x50] sm:$0xff]
    %v255 = vld [vmem:[#allocation2 + $0x58] sm:$0xff]
    %v256 = vld [vmem:[#allocation2 + $0x60] sm:$0xff]
    %v257 = vld [vmem:[#allocation2 + $0x68] sm:$0xff]
    %v258 = vld [vmem:[#allocation2 + $0x70] sm:$0xff]
    %v259 = vld [vmem:[#allocation2 + $0x78] sm:$0xff]
    %v260 = vld [vmem:[#allocation2 + $0x80] sm:$0xff]
    %v261 = vld [vmem:[#allocation2 + $0x88] sm:$0xff]
    %v262 = vld [vmem:[#allocation2 + $0x90] sm:$0xff]
    %v263 = vld [vmem:[#allocation2 + $0x98] sm:$0xff]
    %v264 = vld [vmem:[#allocation2 + $0xa0] sm:$0xff]
    %v265 = vld [vmem:[#allocation2 + $0xa8] sm:$0xff]
    %v266 = vld [vmem:[#allocation2 + $0xb0] sm:$0xff]
    %v267 = vld [vmem:[#allocation2 + $0xb8] sm:$0xff]
    %v268 = vld [vmem:[#allocation2 + $0xc0] sm:$0xff]
    %v269 = vld [vmem:[#allocation2 + $0xc8] sm:$0xff]
    %v286 = vunpack.c.l.b16 %v254
    %v287 = vunpack.c.h.b16 %v254
    %v288 = vunpack.c.l.b16 %v255
    %v289 = vunpack.c.h.b16 %v255
    %v290 = vunpack.c.l.b16 %v256
    %v291 = vunpack.c.h.b16 %v256
    %v292 = vunpack.c.l.b16 %v257
    %v293 = vunpack.c.h.b16 %v257
    %v294 = vunpack.c.l.b16 %v258
    %v295 = vunpack.c.h.b16 %v258
    %v296 = vunpack.c.l.b16 %v259
    %v297 = vunpack.c.h.b16 %v259
    %v298 = vunpack.c.l.b16 %v260
    %v299 = vunpack.c.h.b16 %v260
    %v300 = vunpack.c.l.b16 %v261
    %v301 = vunpack.c.h.b16 %v261
    %v302 = vunpack.c.l.b16 %v262
    %v303 = vunpack.c.h.b16 %v262
    %v304 = vunpack.c.l.b16 %v263
    %v305 = vunpack.c.h.b16 %v263
    %v306 = vunpack.c.l.b16 %v264
    %v307 = vunpack.c.h.b16 %v264
    %v308 = vunpack.c.l.b16 %v265
    %v309 = vunpack.c.h.b16 %v265
    %v310 = vunpack.c.l.b16 %v266
    %v311 = vunpack.c.h.b16 %v266
    %v312 = vunpack.c.l.b16 %v267
    %v313 = vunpack.c.h.b16 %v267
    %v314 = vunpack.c.l.b16 %v268
    %v315 = vunpack.c.h.b16 %v268
    %v316 = vunpack.c.l.b16 %v269
    %v317 = vunpack.c.h.b16 %v269
    %v318 = vpack.c.b16 %v288, %v286
    %v319 = vpack.c.b16 %v289, %v287
    %v320 = vpack.c.b16 %v292, %v290
    %v321 = vpack.c.b16 %v293, %v291
    %v322 = vpack.c.b16 %v296, %v294
    %v323 = vpack.c.b16 %v297, %v295
    %v324 = vpack.c.b16 %v300, %v298
    %v325 = vpack.c.b16 %v301, %v299
    %v326 = vpack.c.b16 %v304, %v302
    %v327 = vpack.c.b16 %v305, %v303
    %v328 = vpack.c.b16 %v308, %v306
    %v329 = vpack.c.b16 %v309, %v307
    %v330 = vpack.c.b16 %v312, %v310
    %v331 = vpack.c.b16 %v313, %v311
    %v332 = vpack.c.b16 %v316, %v314
    %v333 = vpack.c.b16 %v317, %v315
    %v351 = vlaneseq
    %v352 = vshrl.u32 %v351, 7
    %v353 = vsub.s32 0, %v352
    %v354 = vrot.slane %v37, %v353
    %v355 = vlaneseq
    %v356 = vshrl.u32 %v355, 7
    %v357 = vsub.s32 1, %v356
    %v358 = vrot.slane %v37, %v357
    %361 = vmatprep.subr.bf16.mxu0 %v319
    %362 = vmatpush1.bf16.msra.mxu0 %v318
    %363 = vmatprep.subr.bf16.mxu0 %v321
    %364 = vmatpush1.bf16.msra.mxu0 %v320
    %365 = vmatprep.subr.bf16.mxu0 %v323
    %366 = vmatpush1.bf16.msra.mxu0 %v322
    %367 = vmatprep.subr.bf16.mxu0 %v325
    %368 = vmatpush1.bf16.msra.mxu0 %v324
    %369 = vmatprep.subr.bf16.mxu0 %v327
    %370 = vmatpush1.bf16.msra.mxu0 %v326
    %371 = vmatprep.subr.bf16.mxu0 %v329
    %372 = vmatpush1.bf16.msra.mxu0 %v328
    %373 = vmatprep.subr.bf16.mxu0 %v331
    %374 = vmatpush1.bf16.msra.mxu0 %v330
    %375 = vmatprep.subr.bf16.mxu0 %v333
    %376 = vmatpush1.bf16.msra.mxu0 %v332
    %377 = vmatprep.subr.bf16.mxu0 0
    %378 = vmatpush1.bf16.msra.mxu0 0
    %379 = vmatprep.subr.bf16.mxu0 0
    %380 = vmatpush1.bf16.msra.mxu0 0
    %381 = vmatprep.subr.bf16.mxu0 0
    %382 = vmatpush1.bf16.msra.mxu0 0
    %383 = vmatprep.subr.bf16.mxu0 0
    %384 = vmatpush1.bf16.msra.mxu0 0
    %385 = vmatprep.subr.bf16.mxu0 0
    %386 = vmatpush1.bf16.msra.mxu0 0
    %387 = vmatprep.subr.bf16.mxu0 0
    %388 = vmatpush1.bf16.msra.mxu0 0
    %389 = vmatprep.subr.bf16.mxu0 0
    %390 = vmatpush1.bf16.msra.mxu0 0
    %391 = vmatprep.subr.bf16.mxu0 0
    %392 = vmatpush1.bf16.msra.mxu0 0
    %393 = vmatprep.mubr.bf16.mxu0 0
    %394 = vmatmul.mubr.bf16.gmra.mrb[0].mxu0 %v253
    %v395 = vpop.f32.mrb[0].mxu0
    %v396 = vadd.f32 %v354, %v395
    %v397 = vpop.f32.mrb[0].mxu0
    %v398 = vadd.f32 %v358, %v397
    %v399 = vpop.f32.mrb[0].mxu0
    %v400 = vpop.f32.mrb[0].mxu0
    %401 = vdwg.mxu0
    %v402 = vmul.f32 %v396, %v122
    %v403 = vmul.f32 %v398, %v123
    %v404 = vtanh.pop %v402
    %v405 = vtanh.pop %v403
    %v406 = vmul.f32 %v404, 0.5
    %v407 = vmul.f32 %v405, 0.5
    %v408 = vadd.f32 %v406, 0.5
    %v409 = vadd.f32 %v407, 0.5
    %v410 = vsel %vm120, %v404, %v408
    %v411 = vsel %vm121, %v405, %v409
    %v412 = vmul.f32 %v410, %v126
    %v413 = vmul.f32 %v410, %v411
    %415 = vrot.lane.b32.xlu0 %v413, 64
    %v416 = vpop.permute.xlu0 %415
    %v418 = vadd.f32 %v412, %v416
    %v419 = vtanh.pop %v418
    %v420 = vmul.f32 %v411, %v419
    %v421 = vpack.c.bf16 %v239, %v239
    %423 = vrot.lane.b32.xlu0 %v421, 64
    %v424 = vpop.permute.xlu0 %423
    %v427 = vrot.slane %v107, 1
    %v428 = vrot.slane %v109, 1
    %v432 = vsel %vm176, %v424, 0
    %434 = vmatprep.subr.bf16.mxu0 %v161
    %435 = vmatpush1.bf16.msra.mxu0 %v160
    %436 = vmatprep.subr.bf16.mxu0 %v163
    %437 = vmatpush1.bf16.msra.mxu0 %v162
    %438 = vmatprep.subr.bf16.mxu0 %v165
    %439 = vmatpush1.bf16.msra.mxu0 %v164
    %440 = vmatprep.subr.bf16.mxu0 %v167
    %441 = vmatpush1.bf16.msra.mxu0 %v166
    %442 = vmatprep.subr.bf16.mxu0 0
    %443 = vmatpush1.bf16.msra.mxu0 0
    %444 = vmatprep.subr.bf16.mxu0 0
    %445 = vmatpush1.bf16.msra.mxu0 0
    %446 = vmatprep.subr.bf16.mxu0 0
    %447 = vmatpush1.bf16.msra.mxu0 0
    %448 = vmatprep.subr.bf16.mxu0 0
    %449 = vmatpush1.bf16.msra.mxu0 0
    %450 = vmatprep.subr.bf16.mxu0 0
    %451 = vmatpush1.bf16.msra.mxu0 0
    %452 = vmatprep.subr.bf16.mxu0 0
    %453 = vmatpush1.bf16.msra.mxu0 0
    %454 = vmatprep.subr.bf16.mxu0 0
    %455 = vmatpush1.bf16.msra.mxu0 0
    %456 = vmatprep.subr.bf16.mxu0 0
    %457 = vmatpush1.bf16.msra.mxu0 0
    %458 = vmatprep.subr.bf16.mxu0 0
    %459 = vmatpush1.bf16.msra.mxu0 0
    %460 = vmatprep.subr.bf16.mxu0 0
    %461 = vmatpush1.bf16.msra.mxu0 0
    %462 = vmatprep.subr.bf16.mxu0 0
    %463 = vmatpush1.bf16.msra.mxu0 0
    %464 = vmatprep.subr.bf16.mxu0 0
    %465 = vmatpush1.bf16.msra.mxu0 0
    %466 = vmatprep.mubr.bf16.mxu0 0
    %467 = vmatmul.mubr.bf16.gmra.mrb[0].mxu0 %v432
    %v468 = vpop.f32.mrb[0].mxu0
    %v469 = vadd.f32 %v427, %v468
    %v470 = vpop.f32.mrb[0].mxu0
    %v471 = vadd.f32 %v428, %v470
    %v472 = vpop.f32.mrb[0].mxu0
    %v473 = vpop.f32.mrb[0].mxu0
    %474 = vdwg.mxu0
    %v475 = vmul.f32 %v469, %v122
    %v476 = vmul.f32 %v471, %v123
    %v477 = vtanh.pop %v475
    %v478 = vtanh.pop %v476
    %v479 = vmul.f32 %v477, 0.5
    %v480 = vmul.f32 %v478, 0.5
    %v481 = vadd.f32 %v479, 0.5
    %v482 = vadd.f32 %v480, 0.5
    %v483 = vsel %vm120, %v477, %v481
    %v484 = vsel %vm121, %v478, %v482
    %v485 = vmul.f32 %v483, %v237
    %v486 = vmul.f32 %v483, %v484
    %488 = vrot.lane.b32.xlu0 %v486, 64
    %v489 = vpop.permute.xlu0 %488
    %v491 = vadd.f32 %v485, %v489
    %v492 = vtanh.pop %v491
    %v493 = vmul.f32 %v484, %v492
    %495 = vrot.lane.b32.xlu0 %v493, 64
    %v496 = vpop.permute.xlu0 %495
    %v498 = vsel %vm176, %v496, %v420
    %v499 = vpack.c.bf16 %v498, %v498
    %500 = vmatprep.subr.bf16.mxu0 %v319
    %501 = vmatpush1.bf16.msra.mxu0 %v318
    %502 = vmatprep.subr.bf16.mxu0 %v321
    %503 = vmatpush1.bf16.msra.mxu0 %v320
    %504 = vmatprep.subr.bf16.mxu0 %v323
    %505 = vmatpush1.bf16.msra.mxu0 %v322
    %506 = vmatprep.subr.bf16.mxu0 %v325
    %507 = vmatpush1.bf16.msra.mxu0 %v324
    %508 = vmatprep.subr.bf16.mxu0 %v327
    %509 = vmatpush1.bf16.msra.mxu0 %v326
    %510 = vmatprep.subr.bf16.mxu0 %v329
    %511 = vmatpush1.bf16.msra.mxu0 %v328
    %512 = vmatprep.subr.bf16.mxu0 %v331
    %513 = vmatpush1.bf16.msra.mxu0 %v330
    %514 = vmatprep.subr.bf16.mxu0 %v333
    %515 = vmatpush1.bf16.msra.mxu0 %v332
    %516 = vmatprep.subr.bf16.mxu0 0
    %517 = vmatpush1.bf16.msra.mxu0 0
    %518 = vmatprep.subr.bf16.mxu0 0
    %519 = vmatpush1.bf16.msra.mxu0 0
    %520 = vmatprep.subr.bf16.mxu0 0
    %521 = vmatpush1.bf16.msra.mxu0 0
    %522 = vmatprep.subr.bf16.mxu0 0
    %523 = vmatpush1.bf16.msra.mxu0 0
    %524 = vmatprep.subr.bf16.mxu0 0
    %525 = vmatpush1.bf16.msra.mxu0 0
    %526 = vmatprep.subr.bf16.mxu0 0
    %527 = vmatpush1.bf16.msra.mxu0 0
    %528 = vmatprep.subr.bf16.mxu0 0
    %529 = vmatpush1.bf16.msra.mxu0 0
    %530 = vmatprep.subr.bf16.mxu0 0
    %531 = vmatpush1.bf16.msra.mxu0 0
    %532 = vmatprep.mubr.bf16.mxu0 0
    %533 = vmatmul.mubr.bf16.gmra.mrb[0].mxu0 %v499
    %v534 = vpop.f32.mrb[0].mxu0
    %v535 = vadd.f32 %v354, %v534
    %v536 = vpop.f32.mrb[0].mxu0
    %v537 = vadd.f32 %v358, %v536
    %v538 = vpop.f32.mrb[0].mxu0
    %v539 = vpop.f32.mrb[0].mxu0
    %540 = vdwg.mxu0
    %v541 = vmul.f32 %v535, %v122
    %v542 = vmul.f32 %v537, %v123
    %v543 = vtanh.pop %v541
    %v544 = vtanh.pop %v542
    %v545 = vmul.f32 %v543, 0.5
    %v546 = vmul.f32 %v544, 0.5
    %v547 = vadd.f32 %v545, 0.5
    %v548 = vadd.f32 %v546, 0.5
    %v549 = vsel %vm120, %v543, %v547
    %v550 = vsel %vm121, %v544, %v548
    %v551 = vmul.f32 %v549, %v418
    %v552 = vmul.f32 %v549, %v550
    %554 = vrot.lane.b32.xlu0 %v552, 64
    %v555 = vpop.permute.xlu0 %554
    %v557 = vadd.f32 %v551, %v555
    %v558 = vtanh.pop %v557
    %v559 = vmul.f32 %v550, %v558
    %v560 = vpack.c.bf16 %v493, %v493
    %562 = vrot.lane.b32.xlu0 %v560, 64
    %v563 = vpop.permute.xlu0 %562
    %v564 = vrot.slane %v107, 2
    %v565 = vrot.slane %v109, 2
    %v569 = vsel %vm176, %v563, 0
    %571 = vmatprep.subr.bf16.mxu0 %v161
    %572 = vmatpush1.bf16.msra.mxu0 %v160
    %573 = vmatprep.subr.bf16.mxu0 %v163
    %574 = vmatpush1.bf16.msra.mxu0 %v162
    %575 = vmatprep.subr.bf16.mxu0 %v165
    %576 = vmatpush1.bf16.msra.mxu0 %v164
    %577 = vmatprep.subr.bf16.mxu0 %v167
    %578 = vmatpush1.bf16.msra.mxu0 %v166
    %579 = vmatprep.subr.bf16.mxu0 0
    %580 = vmatpush1.bf16.msra.mxu0 0
    %581 = vmatprep.subr.bf16.mxu0 0
    %582 = vmatpush1.bf16.msra.mxu0 0
    %583 = vmatprep.subr.bf16.mxu0 0
    %584 = vmatpush1.bf16.msra.mxu0 0
    %585 = vmatprep.subr.bf16.mxu0 0
    %586 = vmatpush1.bf16.msra.mxu0 0
    %587 = vmatprep.subr.bf16.mxu0 0
    %588 = vmatpush1.bf16.msra.mxu0 0
    %589 = vmatprep.subr.bf16.mxu0 0
    %590 = vmatpush1.bf16.msra.mxu0 0
    %591 = vmatprep.subr.bf16.mxu0 0
    %592 = vmatpush1.bf16.msra.mxu0 0
    %593 = vmatprep.subr.bf16.mxu0 0
    %594 = vmatpush1.bf16.msra.mxu0 0
    %595 = vmatprep.subr.bf16.mxu0 0
    %596 = vmatpush1.bf16.msra.mxu0 0
    %597 = vmatprep.subr.bf16.mxu0 0
    %598 = vmatpush1.bf16.msra.mxu0 0
    %599 = vmatprep.subr.bf16.mxu0 0
    %600 = vmatpush1.bf16.msra.mxu0 0
    %601 = vmatprep.subr.bf16.mxu0 0
    %602 = vmatpush1.bf16.msra.mxu0 0
    %603 = vmatprep.mubr.bf16.mxu0 0
    %604 = vmatmul.mubr.bf16.gmra.mrb[0].mxu0 %v569
    %v605 = vpop.f32.mrb[0].mxu0
    %v606 = vadd.f32 %v564, %v605
    %v607 = vpop.f32.mrb[0].mxu0
    %v608 = vadd.f32 %v565, %v607
    %v609 = vpop.f32.mrb[0].mxu0
    %v610 = vpop.f32.mrb[0].mxu0
    %611 = vdwg.mxu0
    %v612 = vmul.f32 %v606, %v122
    %v613 = vmul.f32 %v608, %v123
    %v614 = vtanh.pop %v612
    %v615 = vtanh.pop %v613
    %v616 = vmul.f32 %v614, 0.5
    %v617 = vmul.f32 %v615, 0.5
    %v618 = vadd.f32 %v616, 0.5
    %v619 = vadd.f32 %v617, 0.5
    %v620 = vsel %vm120, %v614, %v618
    %v621 = vsel %vm121, %v615, %v619
    %v622 = vmul.f32 %v620, %v491
    %v623 = vmul.f32 %v620, %v621
    %625 = vrot.lane.b32.xlu0 %v623, 64
    %v626 = vpop.permute.xlu0 %625
    %v628 = vadd.f32 %v622, %v626
    %v629 = vtanh.pop %v628
    %v630 = vmul.f32 %v621, %v629
    %632 = vrot.lane.b32.xlu0 %v630, 64
    %v633 = vpop.permute.xlu0 %632
    %v635 = vsel %vm176, %v633, %v559
    %v636 = vpack.c.bf16 %v635, %v635
    %637 = vmatprep.subr.bf16.mxu0 %v319
    %638 = vmatpush1.bf16.msra.mxu0 %v318
    %639 = vmatprep.subr.bf16.mxu0 %v321
    %640 = vmatpush1.bf16.msra.mxu0 %v320
    %641 = vmatprep.subr.bf16.mxu0 %v323
    %642 = vmatpush1.bf16.msra.mxu0 %v322
    %643 = vmatprep.subr.bf16.mxu0 %v325
    %644 = vmatpush1.bf16.msra.mxu0 %v324
    %645 = vmatprep.subr.bf16.mxu0 %v327
    %646 = vmatpush1.bf16.msra.mxu0 %v326
    %647 = vmatprep.subr.bf16.mxu0 %v329
    %648 = vmatpush1.bf16.msra.mxu0 %v328
    %649 = vmatprep.subr.bf16.mxu0 %v331
    %650 = vmatpush1.bf16.msra.mxu0 %v330
    %651 = vmatprep.subr.bf16.mxu0 %v333
    %652 = vmatpush1.bf16.msra.mxu0 %v332
    %653 = vmatprep.subr.bf16.mxu0 0
    %654 = vmatpush1.bf16.msra.mxu0 0
    %655 = vmatprep.subr.bf16.mxu0 0
    %656 = vmatpush1.bf16.msra.mxu0 0
    %657 = vmatprep.subr.bf16.mxu0 0
    %658 = vmatpush1.bf16.msra.mxu0 0
    %659 = vmatprep.subr.bf16.mxu0 0
    %660 = vmatpush1.bf16.msra.mxu0 0
    %661 = vmatprep.subr.bf16.mxu0 0
    %662 = vmatpush1.bf16.msra.mxu0 0
    %663 = vmatprep.subr.bf16.mxu0 0
    %664 = vmatpush1.bf16.msra.mxu0 0
    %665 = vmatprep.subr.bf16.mxu0 0
    %666 = vmatpush1.bf16.msra.mxu0 0
    %667 = vmatprep.subr.bf16.mxu0 0
    %668 = vmatpush1.bf16.msra.mxu0 0
    %669 = vmatprep.mubr.bf16.mxu0 0
    %670 = vmatmul.mubr.bf16.gmra.mrb[0].mxu0 %v636
    %v671 = vpop.f32.mrb[0].mxu0
    %v672 = vadd.f32 %v354, %v671
    %v673 = vpop.f32.mrb[0].mxu0
    %v674 = vadd.f32 %v358, %v673
    %v675 = vpop.f32.mrb[0].mxu0
    %v676 = vpop.f32.mrb[0].mxu0
    %677 = vdwg.mxu0
    %v678 = vmul.f32 %v672, %v122
    %v679 = vmul.f32 %v674, %v123
    %v680 = vtanh.pop %v678
    %v681 = vtanh.pop %v679
    %v682 = vmul.f32 %v680, 0.5
    %v683 = vmul.f32 %v681, 0.5
    %v684 = vadd.f32 %v682, 0.5
    %v685 = vadd.f32 %v683, 0.5
    %v686 = vsel %vm120, %v680, %v684
    %v687 = vsel %vm121, %v681, %v685
    %v688 = vmul.f32 %v686, %v557
    %v689 = vmul.f32 %v686, %v687
    %691 = vrot.lane.b32.xlu0 %v689, 64
    %v692 = vpop.permute.xlu0 %691
    %v694 = vadd.f32 %v688, %v692
    %v695 = vtanh.pop %v694
    %v696 = vmul.f32 %v687, %v695
    %v697 = vpack.c.bf16 %v630, %v630
    %699 = vrot.lane.b32.xlu0 %v697, 64
    %v700 = vpop.permute.xlu0 %699
    %v701 = vrot.slane %v107, 3
    %v702 = vrot.slane %v109, 3
    %v706 = vsel %vm176, %v700, 0
    %708 = vmatprep.subr.bf16.mxu0 %v161
    %709 = vmatpush1.bf16.msra.mxu0 %v160
    %710 = vmatprep.subr.bf16.mxu0 %v163
    %711 = vmatpush1.bf16.msra.mxu0 %v162
    %712 = vmatprep.subr.bf16.mxu0 %v165
    %713 = vmatpush1.bf16.msra.mxu0 %v164
    %714 = vmatprep.subr.bf16.mxu0 %v167
    %715 = vmatpush1.bf16.msra.mxu0 %v166
    %716 = vmatprep.subr.bf16.mxu0 0
    %717 = vmatpush1.bf16.msra.mxu0 0
    %718 = vmatprep.subr.bf16.mxu0 0
    %719 = vmatpush1.bf16.msra.mxu0 0
    %720 = vmatprep.subr.bf16.mxu0 0
    %721 = vmatpush1.bf16.msra.mxu0 0
    %722 = vmatprep.subr.bf16.mxu0 0
    %723 = vmatpush1.bf16.msra.mxu0 0
    %724 = vmatprep.subr.bf16.mxu0 0
    %725 = vmatpush1.bf16.msra.mxu0 0
    %726 = vmatprep.subr.bf16.mxu0 0
    %727 = vmatpush1.bf16.msra.mxu0 0
    %728 = vmatprep.subr.bf16.mxu0 0
    %729 = vmatpush1.bf16.msra.mxu0 0
    %730 = vmatprep.subr.bf16.mxu0 0
    %731 = vmatpush1.bf16.msra.mxu0 0
    %732 = vmatprep.subr.bf16.mxu0 0
    %733 = vmatpush1.bf16.msra.mxu0 0
    %734 = vmatprep.subr.bf16.mxu0 0
    %735 = vmatpush1.bf16.msra.mxu0 0
    %736 = vmatprep.subr.bf16.mxu0 0
    %737 = vmatpush1.bf16.msra.mxu0 0
    %738 = vmatprep.subr.bf16.mxu0 0
    %739 = vmatpush1.bf16.msra.mxu0 0
    %740 = vmatprep.mubr.bf16.mxu0 0
    %741 = vmatmul.mubr.bf16.gmra.mrb[0].mxu0 %v706
    %v742 = vpop.f32.mrb[0].mxu0
    %v743 = vadd.f32 %v701, %v742
    %v744 = vpop.f32.mrb[0].mxu0
    %v745 = vadd.f32 %v702, %v744
    %v746 = vpop.f32.mrb[0].mxu0
    %v747 = vpop.f32.mrb[0].mxu0
    %748 = vdwg.mxu0
    %v749 = vmul.f32 %v743, %v122
    %v750 = vmul.f32 %v745, %v123
    %v751 = vtanh.pop %v749
    %v752 = vtanh.pop %v750
    %v753 = vmul.f32 %v751, 0.5
    %v754 = vmul.f32 %v752, 0.5
    %v755 = vadd.f32 %v753, 0.5
    %v756 = vadd.f32 %v754, 0.5
    %v757 = vsel %vm120, %v751, %v755
    %v758 = vsel %vm121, %v752, %v756
    %v759 = vmul.f32 %v757, %v628
    %v760 = vmul.f32 %v757, %v758
    %762 = vrot.lane.b32.xlu0 %v760, 64
    %v763 = vpop.permute.xlu0 %762
    %v765 = vadd.f32 %v759, %v763
    %v766 = vtanh.pop %v765
    %v767 = vmul.f32 %v758, %v766
    %769 = vrot.lane.b32.xlu0 %v767, 64
    %v770 = vpop.permute.xlu0 %769
    %v772 = vsel %vm176, %v770, %v696
    %v773 = vpack.c.bf16 %v772, %v772
    %774 = vmatprep.subr.bf16.mxu0 %v319
    %775 = vmatpush1.bf16.msra.mxu0 %v318
    %776 = vmatprep.subr.bf16.mxu0 %v321
    %777 = vmatpush1.bf16.msra.mxu0 %v320
    %778 = vmatprep.subr.bf16.mxu0 %v323
    %779 = vmatpush1.bf16.msra.mxu0 %v322
    %780 = vmatprep.subr.bf16.mxu0 %v325
    %781 = vmatpush1.bf16.msra.mxu0 %v324
    %782 = vmatprep.subr.bf16.mxu0 %v327
    %783 = vmatpush1.bf16.msra.mxu0 %v326
    %784 = vmatprep.subr.bf16.mxu0 %v329
    %785 = vmatpush1.bf16.msra.mxu0 %v328
    %786 = vmatprep.subr.bf16.mxu0 %v331
    %787 = vmatpush1.bf16.msra.mxu0 %v330
    %788 = vmatprep.subr.bf16.mxu0 %v333
    %789 = vmatpush1.bf16.msra.mxu0 %v332
    %790 = vmatprep.subr.bf16.mxu0 0
    %791 = vmatpush1.bf16.msra.mxu0 0
    %792 = vmatprep.subr.bf16.mxu0 0
    %793 = vmatpush1.bf16.msra.mxu0 0
    %794 = vmatprep.subr.bf16.mxu0 0
    %795 = vmatpush1.bf16.msra.mxu0 0
    %796 = vmatprep.subr.bf16.mxu0 0
    %797 = vmatpush1.bf16.msra.mxu0 0
    %798 = vmatprep.subr.bf16.mxu0 0
    %799 = vmatpush1.bf16.msra.mxu0 0
    %800 = vmatprep.subr.bf16.mxu0 0
    %801 = vmatpush1.bf16.msra.mxu0 0
    %802 = vmatprep.subr.bf16.mxu0 0
    %803 = vmatpush1.bf16.msra.mxu0 0
    %804 = vmatprep.subr.bf16.mxu0 0
    %805 = vmatpush1.bf16.msra.mxu0 0
    %806 = vmatprep.mubr.bf16.mxu0 0
    %807 = vmatmul.mubr.bf16.gmra.mrb[0].mxu0 %v773
    %v808 = vpop.f32.mrb[0].mxu0
    %v809 = vadd.f32 %v354, %v808
    %v810 = vpop.f32.mrb[0].mxu0
    %v811 = vadd.f32 %v358, %v810
    %v812 = vpop.f32.mrb[0].mxu0
    %v813 = vpop.f32.mrb[0].mxu0
    %814 = vdwg.mxu0
    %v815 = vmul.f32 %v809, %v122
    %v816 = vmul.f32 %v811, %v123
    %v817 = vtanh.pop %v815
    %v818 = vtanh.pop %v816
    %v819 = vmul.f32 %v817, 0.5
    %v820 = vmul.f32 %v818, 0.5
    %v821 = vadd.f32 %v819, 0.5
    %v822 = vadd.f32 %v820, 0.5
    %v823 = vsel %vm120, %v817, %v821
    %v824 = vsel %vm121, %v818, %v822
    %v825 = vmul.f32 %v823, %v694
    %v826 = vmul.f32 %v823, %v824
    %828 = vrot.lane.b32.xlu0 %v826, 64
    %v829 = vpop.permute.xlu0 %828
    %v831 = vadd.f32 %v825, %v829
    %v832 = vtanh.pop %v831
    %v833 = vmul.f32 %v824, %v832
    %v834 = vpack.c.bf16 %v767, %v767
    %836 = vrot.lane.b32.xlu0 %v834, 64
    %v837 = vpop.permute.xlu0 %836
    %v838 = vrot.slane %v107, 4
    %v839 = vrot.slane %v109, 4
    %v843 = vsel %vm176, %v837, 0
    %845 = vmatprep.subr.bf16.mxu0 %v161
    %846 = vmatpush1.bf16.msra.mxu0 %v160
    %847 = vmatprep.subr.bf16.mxu0 %v163
    %848 = vmatpush1.bf16.msra.mxu0 %v162
    %849 = vmatprep.subr.bf16.mxu0 %v165
    %850 = vmatpush1.bf16.msra.mxu0 %v164
    %851 = vmatprep.subr.bf16.mxu0 %v167
    %852 = vmatpush1.bf16.msra.mxu0 %v166
    %853 = vmatprep.subr.bf16.mxu0 0
    %854 = vmatpush1.bf16.msra.mxu0 0
    %855 = vmatprep.subr.bf16.mxu0 0
    %856 = vmatpush1.bf16.msra.mxu0 0
    %857 = vmatprep.subr.bf16.mxu0 0
    %858 = vmatpush1.bf16.msra.mxu0 0
    %859 = vmatprep.subr.bf16.mxu0 0
    %860 = vmatpush1.bf16.msra.mxu0 0
    %861 = vmatprep.subr.bf16.mxu0 0
    %862 = vmatpush1.bf16.msra.mxu0 0
    %863 = vmatprep.subr.bf16.mxu0 0
    %864 = vmatpush1.bf16.msra.mxu0 0
    %865 = vmatprep.subr.bf16.mxu0 0
    %866 = vmatpush1.bf16.msra.mxu0 0
    %867 = vmatprep.subr.bf16.mxu0 0
    %868 = vmatpush1.bf16.msra.mxu0 0
    %869 = vmatprep.subr.bf16.mxu0 0
    %870 = vmatpush1.bf16.msra.mxu0 0
    %871 = vmatprep.subr.bf16.mxu0 0
    %872 = vmatpush1.bf16.msra.mxu0 0
    %873 = vmatprep.subr.bf16.mxu0 0
    %874 = vmatpush1.bf16.msra.mxu0 0
    %875 = vmatprep.subr.bf16.mxu0 0
    %876 = vmatpush1.bf16.msra.mxu0 0
    %877 = vmatprep.mubr.bf16.mxu0 0
    %878 = vmatmul.mubr.bf16.gmra.mrb[0].mxu0 %v843
    %v879 = vpop.f32.mrb[0].mxu0
    %v880 = vadd.f32 %v838, %v879
    %v881 = vpop.f32.mrb[0].mxu0
    %v882 = vadd.f32 %v839, %v881
    %v883 = vpop.f32.mrb[0].mxu0
    %v884 = vpop.f32.mrb[0].mxu0
    %885 = vdwg.mxu0
    %v886 = vmul.f32 %v880, %v122
    %v887 = vmul.f32 %v882, %v123
    %v888 = vtanh.pop %v886
    %v889 = vtanh.pop %v887
    %v890 = vmul.f32 %v888, 0.5
    %v891 = vmul.f32 %v889, 0.5
    %v892 = vadd.f32 %v890, 0.5
    %v893 = vadd.f32 %v891, 0.5
    %v894 = vsel %vm120, %v888, %v892
    %v895 = vsel %vm121, %v889, %v893
    %v896 = vmul.f32 %v894, %v765
    %v897 = vmul.f32 %v894, %v895
    %899 = vrot.lane.b32.xlu0 %v897, 64
    %v900 = vpop.permute.xlu0 %899
    %v902 = vadd.f32 %v896, %v900
    %v903 = vtanh.pop %v902
    %v904 = vmul.f32 %v895, %v903
    %906 = vrot.lane.b32.xlu0 %v904, 64
    %v907 = vpop.permute.xlu0 %906
    %v909 = vsel %vm176, %v907, %v833
    %v910 = vpack.c.bf16 %v909, %v909
    %911 = vmatprep.subr.bf16.mxu0 %v319
    %912 = vmatpush1.bf16.msra.mxu0 %v318
    %913 = vmatprep.subr.bf16.mxu0 %v321
    %914 = vmatpush1.bf16.msra.mxu0 %v320
    %915 = vmatprep.subr.bf16.mxu0 %v323
    %916 = vmatpush1.bf16.msra.mxu0 %v322
    %917 = vmatprep.subr.bf16.mxu0 %v325
    %918 = vmatpush1.bf16.msra.mxu0 %v324
    %919 = vmatprep.subr.bf16.mxu0 %v327
    %920 = vmatpush1.bf16.msra.mxu0 %v326
    %921 = vmatprep.subr.bf16.mxu0 %v329
    %922 = vmatpush1.bf16.msra.mxu0 %v328
    %923 = vmatprep.subr.bf16.mxu0 %v331
    %924 = vmatpush1.bf16.msra.mxu0 %v330
    %925 = vmatprep.subr.bf16.mxu0 %v333
    %926 = vmatpush1.bf16.msra.mxu0 %v332
    %927 = vmatprep.subr.bf16.mxu0 0
    %928 = vmatpush1.bf16.msra.mxu0 0
    %929 = vmatprep.subr.bf16.mxu0 0
    %930 = vmatpush1.bf16.msra.mxu0 0
    %931 = vmatprep.subr.bf16.mxu0 0
    %932 = vmatpush1.bf16.msra.mxu0 0
    %933 = vmatprep.subr.bf16.mxu0 0
    %934 = vmatpush1.bf16.msra.mxu0 0
    %935 = vmatprep.subr.bf16.mxu0 0
    %936 = vmatpush1.bf16.msra.mxu0 0
    %937 = vmatprep.subr.bf16.mxu0 0
    %938 = vmatpush1.bf16.msra.mxu0 0
    %939 = vmatprep.subr.bf16.mxu0 0
    %940 = vmatpush1.bf16.msra.mxu0 0
    %941 = vmatprep.subr.bf16.mxu0 0
    %942 = vmatpush1.bf16.msra.mxu0 0
    %943 = vmatprep.mubr.bf16.mxu0 0
    %944 = vmatmul.mubr.bf16.gmra.mrb[0].mxu0 %v910
    %v945 = vpop.f32.mrb[0].mxu0
    %v946 = vadd.f32 %v354, %v945
    %v947 = vpop.f32.mrb[0].mxu0
    %v948 = vadd.f32 %v358, %v947
    %v949 = vpop.f32.mrb[0].mxu0
    %v950 = vpop.f32.mrb[0].mxu0
    %951 = vdwg.mxu0
    %v952 = vmul.f32 %v946, %v122
    %v953 = vmul.f32 %v948, %v123
    %v954 = vtanh.pop %v952
    %v955 = vtanh.pop %v953
    %v956 = vmul.f32 %v954, 0.5
    %v957 = vmul.f32 %v955, 0.5
    %v958 = vadd.f32 %v956, 0.5
    %v959 = vadd.f32 %v957, 0.5
    %v960 = vsel %vm120, %v954, %v958
    %v961 = vsel %vm121, %v955, %v959
    %v962 = vmul.f32 %v960, %v831
    %v963 = vmul.f32 %v960, %v961
    %965 = vrot.lane.b32.xlu0 %v963, 64
    %v966 = vpop.permute.xlu0 %965
    %v968 = vadd.f32 %v962, %v966
    %v969 = vtanh.pop %v968
    %v970 = vmul.f32 %v961, %v969
    %v971 = vpack.c.bf16 %v904, %v904
    %973 = vrot.lane.b32.xlu0 %v971, 64
    %v974 = vpop.permute.xlu0 %973
    %v975 = vrot.slane %v107, 5
    %v976 = vrot.slane %v109, 5
    %v980 = vsel %vm176, %v974, 0
    %982 = vmatprep.subr.bf16.mxu0 %v161
    %983 = vmatpush1.bf16.msra.mxu0 %v160
    %984 = vmatprep.subr.bf16.mxu0 %v163
    %985 = vmatpush1.bf16.msra.mxu0 %v162
    %986 = vmatprep.subr.bf16.mxu0 %v165
    %987 = vmatpush1.bf16.msra.mxu0 %v164
    %988 = vmatprep.subr.bf16.mxu0 %v167
    %989 = vmatpush1.bf16.msra.mxu0 %v166
    %990 = vmatprep.subr.bf16.mxu0 0
    %991 = vmatpush1.bf16.msra.mxu0 0
    %992 = vmatprep.subr.bf16.mxu0 0
    %993 = vmatpush1.bf16.msra.mxu0 0
    %994 = vmatprep.subr.bf16.mxu0 0
    %995 = vmatpush1.bf16.msra.mxu0 0
    %996 = vmatprep.subr.bf16.mxu0 0
    %997 = vmatpush1.bf16.msra.mxu0 0
    %998 = vmatprep.subr.bf16.mxu0 0
    %999 = vmatpush1.bf16.msra.mxu0 0
    %1000 = vmatprep.subr.bf16.mxu0 0
    %1001 = vmatpush1.bf16.msra.mxu0 0
    %1002 = vmatprep.subr.bf16.mxu0 0
    %1003 = vmatpush1.bf16.msra.mxu0 0
    %1004 = vmatprep.subr.bf16.mxu0 0
    %1005 = vmatpush1.bf16.msra.mxu0 0
    %1006 = vmatprep.subr.bf16.mxu0 0
    %1007 = vmatpush1.bf16.msra.mxu0 0
    %1008 = vmatprep.subr.bf16.mxu0 0
    %1009 = vmatpush1.bf16.msra.mxu0 0
    %1010 = vmatprep.subr.bf16.mxu0 0
    %1011 = vmatpush1.bf16.msra.mxu0 0
    %1012 = vmatprep.subr.bf16.mxu0 0
    %1013 = vmatpush1.bf16.msra.mxu0 0
    %1014 = vmatprep.mubr.bf16.mxu0 0
    %1015 = vmatmul.mubr.bf16.gmra.mrb[0].mxu0 %v980
    %v1016 = vpop.f32.mrb[0].mxu0
    %v1017 = vadd.f32 %v975, %v1016
    %v1018 = vpop.f32.mrb[0].mxu0
    %v1019 = vadd.f32 %v976, %v1018
    %v1020 = vpop.f32.mrb[0].mxu0
    %v1021 = vpop.f32.mrb[0].mxu0
    %1022 = vdwg.mxu0
    %v1023 = vmul.f32 %v1017, %v122
    %v1024 = vmul.f32 %v1019, %v123
    %v1025 = vtanh.pop %v1023
    %v1026 = vtanh.pop %v1024
    %v1027 = vmul.f32 %v1025, 0.5
    %v1028 = vmul.f32 %v1026, 0.5
    %v1029 = vadd.f32 %v1027, 0.5
    %v1030 = vadd.f32 %v1028, 0.5
    %v1031 = vsel %vm120, %v1025, %v1029
    %v1032 = vsel %vm121, %v1026, %v1030
    %v1033 = vmul.f32 %v1031, %v902
    %v1034 = vmul.f32 %v1031, %v1032
    %1036 = vrot.lane.b32.xlu0 %v1034, 64
    %v1037 = vpop.permute.xlu0 %1036
    %v1039 = vadd.f32 %v1033, %v1037
    %v1040 = vtanh.pop %v1039
    %v1041 = vmul.f32 %v1032, %v1040
    %1043 = vrot.lane.b32.xlu0 %v1041, 64
    %v1044 = vpop.permute.xlu0 %1043
    %v1046 = vsel %vm176, %v1044, %v970
    %v1047 = vpack.c.bf16 %v1046, %v1046
    %1048 = vmatprep.subr.bf16.mxu0 %v319
    %1049 = vmatpush1.bf16.msra.mxu0 %v318
    %1050 = vmatprep.subr.bf16.mxu0 %v321
    %1051 = vmatpush1.bf16.msra.mxu0 %v320
    %1052 = vmatprep.subr.bf16.mxu0 %v323
    %1053 = vmatpush1.bf16.msra.mxu0 %v322
    %1054 = vmatprep.subr.bf16.mxu0 %v325
    %1055 = vmatpush1.bf16.msra.mxu0 %v324
    %1056 = vmatprep.subr.bf16.mxu0 %v327
    %1057 = vmatpush1.bf16.msra.mxu0 %v326
    %1058 = vmatprep.subr.bf16.mxu0 %v329
    %1059 = vmatpush1.bf16.msra.mxu0 %v328
    %1060 = vmatprep.subr.bf16.mxu0 %v331
    %1061 = vmatpush1.bf16.msra.mxu0 %v330
    %1062 = vmatprep.subr.bf16.mxu0 %v333
    %1063 = vmatpush1.bf16.msra.mxu0 %v332
    %1064 = vmatprep.subr.bf16.mxu0 0
    %1065 = vmatpush1.bf16.msra.mxu0 0
    %1066 = vmatprep.subr.bf16.mxu0 0
    %1067 = vmatpush1.bf16.msra.mxu0 0
    %1068 = vmatprep.subr.bf16.mxu0 0
    %1069 = vmatpush1.bf16.msra.mxu0 0
    %1070 = vmatprep.subr.bf16.mxu0 0
    %1071 = vmatpush1.bf16.msra.mxu0 0
    %1072 = vmatprep.subr.bf16.mxu0 0
    %1073 = vmatpush1.bf16.msra.mxu0 0
    %1074 = vmatprep.subr.bf16.mxu0 0
    %1075 = vmatpush1.bf16.msra.mxu0 0
    %1076 = vmatprep.subr.bf16.mxu0 0
    %1077 = vmatpush1.bf16.msra.mxu0 0
    %1078 = vmatprep.subr.bf16.mxu0 0
    %1079 = vmatpush1.bf16.msra.mxu0 0
    %1080 = vmatprep.mubr.bf16.mxu0 0
    %1081 = vmatmul.mubr.bf16.gmra.mrb[0].mxu0 %v1047
    %v1082 = vpop.f32.mrb[0].mxu0
    %v1083 = vadd.f32 %v354, %v1082
    %v1084 = vpop.f32.mrb[0].mxu0
    %v1085 = vadd.f32 %v358, %v1084
    %v1086 = vpop.f32.mrb[0].mxu0
    %v1087 = vpop.f32.mrb[0].mxu0
    %1088 = vdwg.mxu0
    %v1089 = vmul.f32 %v1083, %v122
    %v1090 = vmul.f32 %v1085, %v123
    %v1091 = vtanh.pop %v1089
    %v1092 = vtanh.pop %v1090
    %v1093 = vmul.f32 %v1091, 0.5
    %v1094 = vmul.f32 %v1092, 0.5
    %v1095 = vadd.f32 %v1093, 0.5
    %v1096 = vadd.f32 %v1094, 0.5
    %v1097 = vsel %vm120, %v1091, %v1095
    %v1098 = vsel %vm121, %v1092, %v1096
    %v1099 = vmul.f32 %v1097, %v968
    %v1100 = vmul.f32 %v1097, %v1098
    %1102 = vrot.lane.b32.xlu0 %v1100, 64
    %v1103 = vpop.permute.xlu0 %1102
    %v1105 = vadd.f32 %v1099, %v1103
    %v1106 = vtanh.pop %v1105
    %v1107 = vmul.f32 %v1098, %v1106
    %v1108 = vpack.c.bf16 %v1041, %v1041
    %1110 = vrot.lane.b32.xlu0 %v1108, 64
    %v1111 = vpop.permute.xlu0 %1110
    %v1112 = vrot.slane %v107, 6
    %v1113 = vrot.slane %v109, 6
    %v1117 = vsel %vm176, %v1111, 0
    %1119 = vmatprep.subr.bf16.mxu0 %v161
    %1120 = vmatpush1.bf16.msra.mxu0 %v160
    %1121 = vmatprep.subr.bf16.mxu0 %v163
    %1122 = vmatpush1.bf16.msra.mxu0 %v162
    %1123 = vmatprep.subr.bf16.mxu0 %v165
    %1124 = vmatpush1.bf16.msra.mxu0 %v164
    %1125 = vmatprep.subr.bf16.mxu0 %v167
    %1126 = vmatpush1.bf16.msra.mxu0 %v166
    %1127 = vmatprep.subr.bf16.mxu0 0
    %1128 = vmatpush1.bf16.msra.mxu0 0
    %1129 = vmatprep.subr.bf16.mxu0 0
    %1130 = vmatpush1.bf16.msra.mxu0 0
    %1131 = vmatprep.subr.bf16.mxu0 0
    %1132 = vmatpush1.bf16.msra.mxu0 0
    %1133 = vmatprep.subr.bf16.mxu0 0
    %1134 = vmatpush1.bf16.msra.mxu0 0
    %1135 = vmatprep.subr.bf16.mxu0 0
    %1136 = vmatpush1.bf16.msra.mxu0 0
    %1137 = vmatprep.subr.bf16.mxu0 0
    %1138 = vmatpush1.bf16.msra.mxu0 0
    %1139 = vmatprep.subr.bf16.mxu0 0
    %1140 = vmatpush1.bf16.msra.mxu0 0
    %1141 = vmatprep.subr.bf16.mxu0 0
    %1142 = vmatpush1.bf16.msra.mxu0 0
    %1143 = vmatprep.subr.bf16.mxu0 0
    %1144 = vmatpush1.bf16.msra.mxu0 0
    %1145 = vmatprep.subr.bf16.mxu0 0
    %1146 = vmatpush1.bf16.msra.mxu0 0
    %1147 = vmatprep.subr.bf16.mxu0 0
    %1148 = vmatpush1.bf16.msra.mxu0 0
    %1149 = vmatprep.subr.bf16.mxu0 0
    %1150 = vmatpush1.bf16.msra.mxu0 0
    %1151 = vmatprep.mubr.bf16.mxu0 0
    %1152 = vmatmul.mubr.bf16.gmra.mrb[0].mxu0 %v1117
    %v1153 = vpop.f32.mrb[0].mxu0
    %v1154 = vadd.f32 %v1112, %v1153
    %v1155 = vpop.f32.mrb[0].mxu0
    %v1156 = vadd.f32 %v1113, %v1155
    %v1157 = vpop.f32.mrb[0].mxu0
    %v1158 = vpop.f32.mrb[0].mxu0
    %1159 = vdwg.mxu0
    %v1160 = vmul.f32 %v1154, %v122
    %v1161 = vmul.f32 %v1156, %v123
    %v1162 = vtanh.pop %v1160
    %v1163 = vtanh.pop %v1161
    %v1164 = vmul.f32 %v1162, 0.5
    %v1165 = vmul.f32 %v1163, 0.5
    %v1166 = vadd.f32 %v1164, 0.5
    %v1167 = vadd.f32 %v1165, 0.5
    %v1168 = vsel %vm120, %v1162, %v1166
    %v1169 = vsel %vm121, %v1163, %v1167
    %v1170 = vmul.f32 %v1168, %v1039
    %v1171 = vmul.f32 %v1168, %v1169
    %1173 = vrot.lane.b32.xlu0 %v1171, 64
    %v1174 = vpop.permute.xlu0 %1173
    %v1176 = vadd.f32 %v1170, %v1174
    %v1177 = vtanh.pop %v1176
    %v1178 = vmul.f32 %v1169, %v1177
    %1180 = vrot.lane.b32.xlu0 %v1178, 64
    %v1181 = vpop.permute.xlu0 %1180
    %v1183 = vsel %vm176, %v1181, %v1107
    %v1184 = vpack.c.bf16 %v1183, %v1183
    %1185 = vmatprep.subr.bf16.mxu0 %v319
    %1186 = vmatpush1.bf16.msra.mxu0 %v318
    %1187 = vmatprep.subr.bf16.mxu0 %v321
    %1188 = vmatpush1.bf16.msra.mxu0 %v320
    %1189 = vmatprep.subr.bf16.mxu0 %v323
    %1190 = vmatpush1.bf16.msra.mxu0 %v322
    %1191 = vmatprep.subr.bf16.mxu0 %v325
    %1192 = vmatpush1.bf16.msra.mxu0 %v324
    %1193 = vmatprep.subr.bf16.mxu0 %v327
    %1194 = vmatpush1.bf16.msra.mxu0 %v326
    %1195 = vmatprep.subr.bf16.mxu0 %v329
    %1196 = vmatpush1.bf16.msra.mxu0 %v328
    %1197 = vmatprep.subr.bf16.mxu0 %v331
    %1198 = vmatpush1.bf16.msra.mxu0 %v330
    %1199 = vmatprep.subr.bf16.mxu0 %v333
    %1200 = vmatpush1.bf16.msra.mxu0 %v332
    %1201 = vmatprep.subr.bf16.mxu0 0
    %1202 = vmatpush1.bf16.msra.mxu0 0
    %1203 = vmatprep.subr.bf16.mxu0 0
    %1204 = vmatpush1.bf16.msra.mxu0 0
    %1205 = vmatprep.subr.bf16.mxu0 0
    %1206 = vmatpush1.bf16.msra.mxu0 0
    %1207 = vmatprep.subr.bf16.mxu0 0
    %1208 = vmatpush1.bf16.msra.mxu0 0
    %1209 = vmatprep.subr.bf16.mxu0 0
    %1210 = vmatpush1.bf16.msra.mxu0 0
    %1211 = vmatprep.subr.bf16.mxu0 0
    %1212 = vmatpush1.bf16.msra.mxu0 0
    %1213 = vmatprep.subr.bf16.mxu0 0
    %1214 = vmatpush1.bf16.msra.mxu0 0
    %1215 = vmatprep.subr.bf16.mxu0 0
    %1216 = vmatpush1.bf16.msra.mxu0 0
    %1217 = vmatprep.mubr.bf16.mxu0 0
    %1218 = vmatmul.mubr.bf16.gmra.mrb[0].mxu0 %v1184
    %v1219 = vpop.f32.mrb[0].mxu0
    %v1220 = vadd.f32 %v354, %v1219
    %v1221 = vpop.f32.mrb[0].mxu0
    %v1222 = vadd.f32 %v358, %v1221
    %v1223 = vpop.f32.mrb[0].mxu0
    %v1224 = vpop.f32.mrb[0].mxu0
    %1225 = vdwg.mxu0
    %v1226 = vmul.f32 %v1220, %v122
    %v1227 = vmul.f32 %v1222, %v123
    %v1228 = vtanh.pop %v1226
    %v1229 = vtanh.pop %v1227
    %v1230 = vmul.f32 %v1228, 0.5
    %v1231 = vmul.f32 %v1229, 0.5
    %v1232 = vadd.f32 %v1230, 0.5
    %v1233 = vadd.f32 %v1231, 0.5
    %v1234 = vsel %vm120, %v1228, %v1232
    %v1235 = vsel %vm121, %v1229, %v1233
    %v1236 = vmul.f32 %v1234, %v1105
    %v1237 = vmul.f32 %v1234, %v1235
    %1239 = vrot.lane.b32.xlu0 %v1237, 64
    %v1240 = vpop.permute.xlu0 %1239
    %v1242 = vadd.f32 %v1236, %v1240
    %v1243 = vtanh.pop %v1242
    %v1244 = vmul.f32 %v1235, %v1243
    %v1245 = vpack.c.bf16 %v1178, %v1178
    %1247 = vrot.lane.b32.xlu0 %v1245, 64
    %v1248 = vpop.permute.xlu0 %1247
    %v1249 = vrot.slane %v107, 7
    %v1250 = vrot.slane %v109, 7
    %v1254 = vsel %vm176, %v1248, 0
    %1256 = vmatprep.subr.bf16.mxu0 %v161
    %1257 = vmatpush1.bf16.msra.mxu0 %v160
    %1258 = vmatprep.subr.bf16.mxu0 %v163
    %1259 = vmatpush1.bf16.msra.mxu0 %v162
    %1260 = vmatprep.subr.bf16.mxu0 %v165
    %1261 = vmatpush1.bf16.msra.mxu0 %v164
    %1262 = vmatprep.subr.bf16.mxu0 %v167
    %1263 = vmatpush1.bf16.msra.mxu0 %v166
    %1264 = vmatprep.subr.bf16.mxu0 0
    %1265 = vmatpush1.bf16.msra.mxu0 0
    %1266 = vmatprep.subr.bf16.mxu0 0
    %1267 = vmatpush1.bf16.msra.mxu0 0
    %1268 = vmatprep.subr.bf16.mxu0 0
    %1269 = vmatpush1.bf16.msra.mxu0 0
    %1270 = vmatprep.subr.bf16.mxu0 0
    %1271 = vmatpush1.bf16.msra.mxu0 0
    %1272 = vmatprep.subr.bf16.mxu0 0
    %1273 = vmatpush1.bf16.msra.mxu0 0
    %1274 = vmatprep.subr.bf16.mxu0 0
    %1275 = vmatpush1.bf16.msra.mxu0 0
    %1276 = vmatprep.subr.bf16.mxu0 0
    %1277 = vmatpush1.bf16.msra.mxu0 0
    %1278 = vmatprep.subr.bf16.mxu0 0
    %1279 = vmatpush1.bf16.msra.mxu0 0
    %1280 = vmatprep.subr.bf16.mxu0 0
    %1281 = vmatpush1.bf16.msra.mxu0 0
    %1282 = vmatprep.subr.bf16.mxu0 0
    %1283 = vmatpush1.bf16.msra.mxu0 0
    %1284 = vmatprep.subr.bf16.mxu0 0
    %1285 = vmatpush1.bf16.msra.mxu0 0
    %1286 = vmatprep.subr.bf16.mxu0 0
    %1287 = vmatpush1.bf16.msra.mxu0 0
    %1288 = vmatprep.mubr.bf16.mxu0 0
    %1289 = vmatmul.mubr.bf16.gmra.mrb[0].mxu0 %v1254
    %v1290 = vpop.f32.mrb[0].mxu0
    %v1291 = vadd.f32 %v1249, %v1290
    %v1292 = vpop.f32.mrb[0].mxu0
    %v1293 = vadd.f32 %v1250, %v1292
    %v1294 = vpop.f32.mrb[0].mxu0
    %v1295 = vpop.f32.mrb[0].mxu0
    %1296 = vdwg.mxu0
    %v1297 = vmul.f32 %v1291, %v122
    %v1298 = vmul.f32 %v1293, %v123
    %v1299 = vtanh.pop %v1297
    %v1300 = vtanh.pop %v1298
    %v1301 = vmul.f32 %v1299, 0.5
    %v1302 = vmul.f32 %v1300, 0.5
    %v1303 = vadd.f32 %v1301, 0.5
    %v1304 = vadd.f32 %v1302, 0.5
    %v1305 = vsel %vm120, %v1299, %v1303
    %v1306 = vsel %vm121, %v1300, %v1304
    %v1307 = vmul.f32 %v1305, %v1176
    %v1308 = vmul.f32 %v1305, %v1306
    %1310 = vrot.lane.b32.xlu0 %v1308, 64
    %v1311 = vpop.permute.xlu0 %1310
    %v1313 = vadd.f32 %v1307, %v1311
    %v1314 = vtanh.pop %v1313
    %v1315 = vmul.f32 %v1306, %v1314
    %1317 = vrot.lane.b32.xlu0 %v1315, 64
    %v1318 = vpop.permute.xlu0 %1317
    %v1320 = vsel %vm176, %v1318, %v1244
    %v1321 = vpack.c.bf16 %v1320, %v1320
    %1322 = vmatprep.subr.bf16.mxu0 %v319
    %1323 = vmatpush1.bf16.msra.mxu0 %v318
    %1324 = vmatprep.subr.bf16.mxu0 %v321
    %1325 = vmatpush1.bf16.msra.mxu0 %v320
    %1326 = vmatprep.subr.bf16.mxu0 %v323
    %1327 = vmatpush1.bf16.msra.mxu0 %v322
    %1328 = vmatprep.subr.bf16.mxu0 %v325
    %1329 = vmatpush1.bf16.msra.mxu0 %v324
    %1330 = vmatprep.subr.bf16.mxu0 %v327
    %1331 = vmatpush1.bf16.msra.mxu0 %v326
    %1332 = vmatprep.subr.bf16.mxu0 %v329
    %1333 = vmatpush1.bf16.msra.mxu0 %v328
    %1334 = vmatprep.subr.bf16.mxu0 %v331
    %1335 = vmatpush1.bf16.msra.mxu0 %v330
    %1336 = vmatprep.subr.bf16.mxu0 %v333
    %1337 = vmatpush1.bf16.msra.mxu0 %v332
    %1338 = vmatprep.subr.bf16.mxu0 0
    %1339 = vmatpush1.bf16.msra.mxu0 0
    %1340 = vmatprep.subr.bf16.mxu0 0
    %1341 = vmatpush1.bf16.msra.mxu0 0
    %1342 = vmatprep.subr.bf16.mxu0 0
    %1343 = vmatpush1.bf16.msra.mxu0 0
    %1344 = vmatprep.subr.bf16.mxu0 0
    %1345 = vmatpush1.bf16.msra.mxu0 0
    %1346 = vmatprep.subr.bf16.mxu0 0
    %1347 = vmatpush1.bf16.msra.mxu0 0
    %1348 = vmatprep.subr.bf16.mxu0 0
    %1349 = vmatpush1.bf16.msra.mxu0 0
    %1350 = vmatprep.subr.bf16.mxu0 0
    %1351 = vmatpush1.bf16.msra.mxu0 0
    %1352 = vmatprep.subr.bf16.mxu0 0
    %1353 = vmatpush1.bf16.msra.mxu0 0
    %1354 = vmatprep.mubr.bf16.mxu0 0
    %1355 = vmatmul.mubr.bf16.gmra.mrb[0].mxu0 %v1321
    %v1356 = vpop.f32.mrb[0].mxu0
    %v1357 = vadd.f32 %v354, %v1356
    %v1358 = vpop.f32.mrb[0].mxu0
    %v1359 = vadd.f32 %v358, %v1358
    %v1360 = vpop.f32.mrb[0].mxu0
    %v1361 = vpop.f32.mrb[0].mxu0
    %1362 = vdwg.mxu0
    %v1363 = vmul.f32 %v1357, %v122
    %v1364 = vmul.f32 %v1359, %v123
    %v1365 = vtanh.pop %v1363
    %v1366 = vtanh.pop %v1364
    %v1367 = vmul.f32 %v1365, 0.5
    %v1368 = vmul.f32 %v1366, 0.5
    %v1369 = vadd.f32 %v1367, 0.5
    %v1370 = vadd.f32 %v1368, 0.5
    %v1371 = vsel %vm120, %v1365, %v1369
    %v1372 = vsel %vm121, %v1366, %v1370
    %v1373 = vmul.f32 %v1371, %v1242
    %v1374 = vmul.f32 %v1371, %v1372
    %1376 = vrot.lane.b32.xlu0 %v1374, 64
    %v1377 = vpop.permute.xlu0 %1376
    %v1379 = vadd.f32 %v1373, %v1377
    %v1380 = vtanh.pop %v1379
    %v1381 = vmul.f32 %v1372, %v1380
    %v1382 = vld [vmem:[%s3 + $0x2] sm:$0x1]
    %v1383 = vld [vmem:[%s3 + $0x3] sm:$0x1]
    %v1385 = vlaneseq
    %v1386 = vshrl.u32 %v1385, 7
    %v1387 = vsub.s32 0, %v1386
    %v1388 = vrot.slane %v1382, %v1387
    %1389 = vrot.lane.b32.xlu0 %v1388, 64
    %v1390 = vpop.permute.xlu0 %1389
    %v1392 = vmul.f32 %v1381, %v1390
    %1394 = vrot.lane.b32.xlu0 %v1392, 64
    %v1395 = vpop.permute.xlu0 %1394
    %vm1397 = vcmask 516096
    %v1398 = vsel %vm1397, %v1395, 0.0
    %1399 = vadd.xlane.f32.xlu0 %v1398
    %v1400 = vpop.xlane.xlu0 %1399
    %v1401 = vadd.f32 %v1400, %v1383
    %vm1402 = vcmask 0
    %1403 = vst.msk [vmem:[#allocation5] sm:$0x1] %vm1402, %v1401
    %v1404 = vsel %vm176, %v1318, %v1313
    %1405 = vst [vmem:[%s5] sm:$0x1] %v1404
    %1407 = vrot.lane.b32.xlu0 %v1381, 64
    %v1408 = vpop.permute.xlu0 %1407
    %v1410 = vsel %vm176, %v1408, %v1379
    %s1411 = scalar_lea.vmem %s5, 1
    %1412 = vst [vmem:[%s1411] sm:$0x1] %v1410
    // Predicated region
    $region22: #{lstm_forward.1} parent=1 // pred_check
      _
    $region23: #{lstm_forward.1} parent=1 // pred_check_branch
      %1414 = sbr.rel (0) target = $region25
    $region24: #{lstm_forward.1} parent=1 // pred_region
      %s1416 = ssub.s32 16, 16
      %1417 = vsyncadd [#allocation4], %s1416
      %s1419 = sshll.u32 [#allocation5], 4
      %s1420 = int_to_ptr.vmem [resolvable:$true] %s1419
      %1422 = dma.vmem_to_hbm [thread:$0]  %s1420, 16, %s4, [#allocation4]
    $region25: #{lstm_forward.1} parent=1 // pred_fallthru
      _
    // Predicated region
    $region26: #{lstm_forward.1} parent=1 // pred_check
      _
    $region27: #{lstm_forward.1} parent=1 // pred_check_branch
      %1424 = sbr.rel (0) target = $region29
    $region28: #{lstm_forward.1} parent=1 // pred_region
      _
    $region29: #{lstm_forward.1} parent=1 // pred_fallthru
      _
    // Predicated region
    $region30: #{lstm_forward.1} parent=1 // pred_check
      _
    $region31: #{lstm_forward.1} parent=1 // pred_check_branch
      %1426 = sbr.rel (0) target = $region33
    $region32: #{lstm_forward.1} parent=1 // pred_region
      %1427 = dma.done [#allocation4], 16
    $region33: #{lstm_forward.1} parent=1 // pred_fallthru
      _
    // Predicated region
    $region34: #{lstm_forward.1} parent=1 // pred_check
      _
    $region35: #{lstm_forward.1} parent=1 // pred_check_branch
      %1429 = sbr.rel (0) target = $region37
    $region36: #{lstm_forward.1} parent=1 // pred_region
      _
    $region37: #{lstm_forward.1} parent=1 // pred_fallthru
      _
    %1430 = vsyncpa [#allocation3], 1
    %1431 = vsyncpa [#allocation4], 1

</llo_original>
